<compile_context>
chip_gen: v5e
topology: v5e:2x2
jax: 0.10.0
libtpu: 0.0.40
codegen_flags: <defaults>
</compile_context>

<pallas_src>
import functools
import math

import jax
import jax.numpy as jnp
import numpy as np
from jax import lax
from jax.experimental import pallas as pl
from jax.experimental.pallas import tpu as pltpu


def _round_up(a, m):
    return ((a + m - 1) // m) * m


def _vmem_capacity_bytes():
    try:
        return int(pltpu.get_tpu_info().vmem_capacity_bytes)
    except Exception:
        return 64 << 20  # conservative default (v7x per-core VMEM)


def _vmem_bytes_estimate(tile_b, d_in, hidden, weights_single_buffered):
    wbuf = 1 if weights_single_buffered else 2
    weights = wbuf * 2 * d_in * hidden * 2          # W_enc^T + W_dec in bf16
    biases = wbuf * (hidden + d_in) * 4
    io = 2 * 2 * tile_b * d_in * 4                  # x tile + recon tile, double-buffered
    inter = 6 * tile_b * hidden * 4                 # pre, pre_bits, cmp/cnt temps, z, bf16 copy, slack
    accs = 3 * 8 * max(d_in, 128) * 4               # per-column accumulators (padded tiles)
    return weights + biases + io + inter + accs


def _sae_kernel(x_ref, w_enc_ref, b_enc_ref, w_dec_ref, b_dec_ref,
                recon_ref, fvu_ref,
                colsum_ref, err2_ref, xsq_ref,
                *, k, b_total, has_tail, exact_threshold):
    i = pl.program_id(0)
    n = pl.num_programs(0)

    @pl.when(i == 0)
    def _init():
        colsum_ref[...] = jnp.zeros_like(colsum_ref)
        err2_ref[...] = jnp.zeros_like(err2_ref)
        xsq_ref[...] = jnp.zeros_like(xsq_ref)

    x = x_ref[...]                                   # (TILE_B, d_in) f32
    b_dec = b_dec_ref[...]                           # (1, d_in)      f32
    tile_b = x.shape[0]

    # ---- encoder: bf16 MXU inputs, f32 accumulate; ReLU in f32 ----
    sae_in = (x - b_dec).astype(jnp.bfloat16)
    pre = jnp.dot(sae_in, w_enc_ref[...], preferred_element_type=jnp.float32)
    pre = jnp.maximum(pre + b_enc_ref[...], 0.0)     # (TILE_B, hidden) f32

    # ---- per-row top-k threshold tau = k-th largest of pre -------------
    # Bitwise threshold search on the (non-negative, post-ReLU) float bit
    # pattern; cost is independent of k.  exact_threshold=True walks all 31
    # value bits (exact tau); False stops after the top 15 bits (approximate,
    # tau rounded down -> may keep slightly more than k latents).
    pre_bits = pltpu.bitcast(pre, jnp.int32)
    n_bits = 31 if exact_threshold else 15

    def bit_step(j, tau_bits):
        cand = tau_bits | (jnp.int32(1) << (jnp.int32(30) - j))
        cnt = jnp.sum((pre_bits >= cand).astype(jnp.int32),
                      axis=1, keepdims=True)
        return jnp.where(cnt >= k, cand, tau_bits)

    tau_bits = lax.fori_loop(0, n_bits, bit_step,
                             jnp.zeros((tile_b, 1), jnp.int32))
    tau = pltpu.bitcast(tau_bits, jnp.float32)

    z = jnp.where(pre >= tau, pre, 0.0)              # sparse activations (f32)

    # ---- decoder ----
    recon = jnp.dot(z.astype(jnp.bfloat16), w_dec_ref[...],
                    preferred_element_type=jnp.float32) + b_dec
    recon_ref[...] = recon

    # ---- FVU running statistics (per-column, lane-dense) ----
    err = recon - x

    def _accumulate(xv, ev):
        colsum_ref[...] += jnp.sum(xv, axis=0, keepdims=True)
        err2_ref[...] += jnp.sum(ev * ev, axis=0, keepdims=True)
        xsq_ref[...] += jnp.sum(xv * xv, axis=0, keepdims=True)

    if has_tail:
        @pl.when(i < n - 1)
        def _full_block():
            _accumulate(x, err)

        @pl.when(i == n - 1)
        def _tail_block():
            rows = i * tile_b + lax.broadcasted_iota(jnp.int32, (tile_b, 1), 0)
            valid = rows < b_total
            _accumulate(jnp.where(valid, x, 0.0), jnp.where(valid, err, 0.0))
    else:
        _accumulate(x, err)

    @pl.when(i == n - 1)
    def _finalize():
        cs = colsum_ref[...]
        var_col = xsq_ref[...] - cs * cs * (1.0 / b_total)   # per-column cancel
        num = jnp.sum(err2_ref[...], axis=1, keepdims=True)  # (1, 1)
        den = jnp.sum(var_col, axis=1, keepdims=True)        # (1, 1)
        fvu_ref[...] = num / den


def sae_contrastive_forward(x, w_enc_t, b_enc, w_dec, b_dec, *, k,
                            tile_b=256, exact_threshold=True):
    """x: (B, d_in); w_enc_t: (d_in, hidden); w_dec: (hidden, d_in)."""
    B, d_in = x.shape
    hidden = w_enc_t.shape[1]
    k = int(k)

    # MXU / lane alignment for the latent dimension (zero-padded latents are
    # inert: pre = relu(0) = 0 and their decoder rows are zero).
    hidden_p = _round_up(hidden, 128)

    # Generation-aware VMEM budget (~54 MiB on v7x, ~109 MiB on v5e/v6e).
    vmem_cap = _vmem_capacity_bytes()
    budget = max(min(int(vmem_cap * 0.85), vmem_cap - (8 << 20)), 16 << 20)

    tile_b = max(8, _round_up(min(int(tile_b), _round_up(B, 8)), 8))
    while tile_b > 8 and _vmem_bytes_estimate(tile_b, d_in, hidden_p, True) > budget:
        tile_b = max(8, _round_up(tile_b // 2, 8))

    b_pad = _round_up(B, tile_b)
    grid = b_pad // tile_b
    has_tail = b_pad != B

    x32 = jnp.asarray(x, jnp.float32)
    x_pad = jnp.pad(x32, ((0, b_pad - B), (0, 0))) if has_tail else x32

    w_enc_bf = jnp.asarray(w_enc_t, jnp.bfloat16)          # (d_in, hidden)
    w_dec_bf = jnp.asarray(w_dec, jnp.bfloat16)            # (hidden, d_in)
    b_enc2 = jnp.asarray(b_enc, jnp.float32).reshape(1, hidden)
    b_dec2 = jnp.asarray(b_dec, jnp.float32).reshape(1, d_in)
    if hidden_p != hidden:
        w_enc_bf = jnp.pad(w_enc_bf, ((0, 0), (0, hidden_p - hidden)))
        w_dec_bf = jnp.pad(w_dec_bf, ((0, hidden_p - hidden), (0, 0)))
        b_enc2 = jnp.pad(b_enc2, ((0, 0), (0, hidden_p - hidden)))

    kernel = functools.partial(_sae_kernel, k=k, b_total=int(B),
                               has_tail=has_tail,
                               exact_threshold=bool(exact_threshold))

    # Try single-buffered resident weights first (pl.Buffered(1)); fall back
    # to plain (double-buffered) BlockSpecs if this jax build rejects it.
    for use_buffered in (True, False):
        def resident(shape, index_map, _buf=use_buffered):
            if _buf:
                return pl.BlockSpec(shape, index_map,
                                    pipeline_mode=pl.Buffered(1))
            return pl.BlockSpec(shape, index_map)

        est = _vmem_bytes_estimate(tile_b, d_in, hidden_p, use_buffered)
        vmem_limit = int(min(budget, max(int(1.5 * est), 8 << 20)))

        try:
            out = pl.pallas_call(
                kernel,
                out_shape=(jax.ShapeDtypeStruct((b_pad, d_in), jnp.float32),
                           jax.ShapeDtypeStruct((1, 1), jnp.float32)),
                grid_spec=pltpu.PrefetchScalarGridSpec(
                    num_scalar_prefetch=0,
                    grid=(grid,),
                    in_specs=[
                        pl.BlockSpec((tile_b, d_in), lambda i: (i, 0)),    # x tile
                        resident((d_in, hidden_p), lambda i: (0, 0)),      # W_enc^T (resident)
                        resident((1, hidden_p), lambda i: (0, 0)),         # b_enc   (resident)
                        resident((hidden_p, d_in), lambda i: (0, 0)),      # W_dec   (resident)
                        resident((1, d_in), lambda i: (0, 0)),             # b_dec   (resident)
                    ],
                    out_specs=(
                        pl.BlockSpec((tile_b, d_in), lambda i: (i, 0)),    # recon tile
                        pl.BlockSpec((1, 1), lambda i: (0, 0)),            # fvu (last step)
                    ),
                    scratch_shapes=[
                        pltpu.VMEM((1, d_in), jnp.float32),   # running per-column sum of x
                        pltpu.VMEM((1, d_in), jnp.float32),   # running per-column sum of err^2
                        pltpu.VMEM((1, d_in), jnp.float32),   # running per-column sum of x^2
                    ],
                ),
                compiler_params=pltpu.CompilerParams(
                    dimension_semantics=("arbitrary",),   # batch axis carries accumulators
                    vmem_limit_bytes=vmem_limit,
                ),
            )(x_pad, w_enc_bf, b_enc2, w_dec_bf, b_dec2)
            # Block here so a Buffered(1) rejection (older jax) surfaces and
            # we can retry with plain BlockSpecs.
            out = jax.block_until_ready(out)
            recon_pad, fvu = out
            return recon_pad[:B], fvu[0, 0]
        except Exception:
            if not use_buffered:
                raise
            # retry without pipeline_mode=pl.Buffered(1)


def _reference_forward(x, w_enc_t, b_enc, w_dec, b_dec, k):
    """Pure-JAX reference mirroring the PyTorch module (same bf16 MXU casts)."""
    bf16 = jnp.bfloat16
    sae_in = x - b_dec
    pre = jax.nn.relu(
        jnp.dot(sae_in.astype(bf16), w_enc_t.astype(bf16),
                preferred_element_type=jnp.float32) + b_enc)
    vals, idx = jax.lax.top_k(pre, k)
    B = x.shape[0]
    z = jnp.zeros_like(pre).at[jnp.arange(B)[:, None], idx].set(vals)
    recon = jnp.dot(z.astype(bf16), w_dec.astype(bf16),
                    preferred_element_type=jnp.float32) + b_dec
    e = recon - x
    total_var = jnp.sum((x - x.mean(0)) ** 2)
    return recon, jnp.sum(e ** 2) / total_var


if __name__ == "__main__":
    configs = [
        # padded/masked tail block (B not a multiple of tile_b), hidden == 128
        dict(B=50, d_in=32, scale=4, k=8, tile_b=16),
        # exact multiple of the tile, hidden = 96 -> padded to 128 in wrapper
        dict(B=24, d_in=32, scale=3, k=24, tile_b=8),
    ]

    key = jax.random.PRNGKey(0)
    for cfg in configs:
        B, d_in, scale, k, tile_b = (cfg["B"], cfg["d_in"], cfg["scale"],
                                     cfg["k"], cfg["tile_b"])
        hidden = d_in * scale
        key, kx, kw, kbe, kbd = jax.random.split(key, 5)

        # nn.Linear-style encoder weight init; W_dec = row-normalized clone
        bound = 1.0 / math.sqrt(d_in)
        enc_weight = jax.random.uniform(kw, (hidden, d_in), jnp.float32,
                                        minval=-bound, maxval=bound)
        eps = jnp.finfo(jnp.float32).eps
        w_dec = enc_weight / (jnp.linalg.norm(enc_weight, axis=1,
                                              keepdims=True) + eps)
        w_enc_t = enc_weight.T                                  # (d_in, hidden)
        b_enc = 0.05 * jax.random.normal(kbe, (hidden,), jnp.float32)
        b_dec = 0.05 * jax.random.normal(kbd, (d_in,), jnp.float32)
        x = jax.random.normal(kx, (B, d_in), jnp.float32)

        recon, fvu = sae_contrastive_forward(x, w_enc_t, b_enc, w_dec, b_dec,
                                             k=k, tile_b=tile_b)
        recon = jax.block_until_ready(recon)
        fvu = jax.block_until_ready(fvu)

        ref_recon, ref_fvu = _reference_forward(x, w_enc_t, b_enc, w_dec, b_dec, k)
        np.testing.assert_allclose(np.asarray(recon), np.asarray(ref_recon),
                                   rtol=1e-3, atol=1e-3)
        np.testing.assert_allclose(float(fvu), float(ref_fvu),
                                   rtol=5e-3, atol=1e-6)

    print("KERNEL_OK")
</pallas_src>

<mosaic_0001>
module attributes {stable_mosaic.version = 11 : i64} {
  func.func @_sae_kernel(%arg0: i32, %arg1: memref<16x32xf32, #tpu.memory_space<vmem>>, %arg2: memref<32x128xbf16, #tpu.memory_space<vmem>>, %arg3: memref<1x128xf32, #tpu.memory_space<vmem>>, %arg4: memref<128x32xbf16, #tpu.memory_space<vmem>>, %arg5: memref<1x32xf32, #tpu.memory_space<vmem>>, %arg6: memref<16x32xf32, #tpu.memory_space<vmem>>, %arg7: memref<1x1xf32, #tpu.memory_space<vmem>>, %arg8: memref<1x32xf32, #tpu.memory_space<vmem>>, %arg9: memref<1x32xf32, #tpu.memory_space<vmem>>, %arg10: memref<1x32xf32, #tpu.memory_space<vmem>>) attributes {dimension_semantics = [#tpu.dimension_semantics<arbitrary>], iteration_bounds = array<i64: 4>, scalar_prefetch = 0 : i64, scratch_operands = 3 : i64, tpu.core_type = #tpu.core_type<tc>, window_params = [{transform_indices = @transform_0, window_bounds = array<i64: 16, 32>}, {pipeline_mode = #tpu.pipeline_mode<synchronous>, transform_indices = @transform_1, window_bounds = array<i64: 32, 128>}, {pipeline_mode = #tpu.pipeline_mode<synchronous>, transform_indices = @transform_2, window_bounds = array<i64: 1, 128>}, {pipeline_mode = #tpu.pipeline_mode<synchronous>, transform_indices = @transform_3, window_bounds = array<i64: 128, 32>}, {pipeline_mode = #tpu.pipeline_mode<synchronous>, transform_indices = @transform_4, window_bounds = array<i64: 1, 32>}, {transform_indices = @transform_5, window_bounds = array<i64: 16, 32>}, {pipeline_mode = #tpu.pipeline_mode<synchronous>, transform_indices = @transform_6, window_bounds = array<i64: 1, 1>}]} {
    %c0_i32 = arith.constant 0 : i32
    %0 = arith.cmpi eq, %arg0, %c0_i32 : i32
    %1 = arith.extui %0 : i1 to i32
    %c0_i32_0 = arith.constant 0 : i32
    %2 = arith.cmpi ne, %1, %c0_i32_0 : i32
    scf.if %2 {
      %cst_23 = arith.constant 0.000000e+00 : f32
      %40 = vector.broadcast %cst_23 : f32 to vector<1x32xf32>
      %c0_24 = arith.constant 0 : index
      %c0_25 = arith.constant 0 : index
      %41 = vector.load %arg8[%c0_24, %c0_25] : memref<1x32xf32, #tpu.memory_space<vmem>>, vector<1x32xf32>
      tpu.vector_store %arg8[%c0_24, %c0_25], %40 {strides = array<i32>} : memref<1x32xf32, #tpu.memory_space<vmem>>, vector<1x32xf32>,
      %cst_26 = arith.constant 0.000000e+00 : f32
      %42 = vector.broadcast %cst_26 : f32 to vector<1x32xf32>
      %c0_27 = arith.constant 0 : index
      %c0_28 = arith.constant 0 : index
      %43 = vector.load %arg9[%c0_27, %c0_28] : memref<1x32xf32, #tpu.memory_space<vmem>>, vector<1x32xf32>
      tpu.vector_store %arg9[%c0_27, %c0_28], %42 {strides = array<i32>} : memref<1x32xf32, #tpu.memory_space<vmem>>, vector<1x32xf32>,
      %cst_29 = arith.constant 0.000000e+00 : f32
      %44 = vector.broadcast %cst_29 : f32 to vector<1x32xf32>
      %c0_30 = arith.constant 0 : index
      %c0_31 = arith.constant 0 : index
      %45 = vector.load %arg10[%c0_30, %c0_31] : memref<1x32xf32, #tpu.memory_space<vmem>>, vector<1x32xf32>
      tpu.vector_store %arg10[%c0_30, %c0_31], %44 {strides = array<i32>} : memref<1x32xf32, #tpu.memory_space<vmem>>, vector<1x32xf32>,
    } else {
    }
    %c0 = arith.constant 0 : index
    %c0_1 = arith.constant 0 : index
    %3 = vector.load %arg1[%c0, %c0_1] : memref<16x32xf32, #tpu.memory_space<vmem>>, vector<16x32xf32>
    %c0_2 = arith.constant 0 : index
    %c0_3 = arith.constant 0 : index
    %4 = vector.load %arg5[%c0_2, %c0_3] : memref<1x32xf32, #tpu.memory_space<vmem>>, vector<1x32xf32>
    %5 = vector.broadcast %4 : vector<1x32xf32> to vector<16x32xf32>
    %6 = arith.subf %3, %5 : vector<16x32xf32>
    %7 = arith.truncf %6 : vector<16x32xf32> to vector<16x32xbf16>
    %c0_4 = arith.constant 0 : index
    %c0_5 = arith.constant 0 : index
    %8 = vector.load %arg2[%c0_4, %c0_5] : memref<32x128xbf16, #tpu.memory_space<vmem>>, vector<32x128xbf16>
    %cst = arith.constant dense<0.000000e+00> : vector<16x128xf32>
    %9 = tpu.matmul %7, %8, %cst {dimension_numbers = #tpu.dot_dimension_numbers<[1], [0], [0], [1], [0, 0, 1, 1], [], []>} : vector<16x32xbf16>, vector<32x128xbf16>, vector<16x128xf32> -> vector<16x128xf32>
    %c0_6 = arith.constant 0 : index
    %c0_7 = arith.constant 0 : index
    %10 = vector.load %arg3[%c0_6, %c0_7] : memref<1x128xf32, #tpu.memory_space<vmem>>, vector<1x128xf32>
    %11 = vector.broadcast %10 : vector<1x128xf32> to vector<16x128xf32>
    %12 = arith.addf %9, %11 : vector<16x128xf32>
    %cst_8 = arith.constant 0.000000e+00 : f32
    %13 = vector.broadcast %cst_8 : f32 to vector<16x128xf32>
    %14 = arith.maximumf %12, %13 : vector<16x128xf32>
    %15 = tpu.bitcast %14 : vector<16x128xf32> -> vector<16x128xi32>
    %c0_i32_9 = arith.constant 0 : i32
    %16 = vector.broadcast %c0_i32_9 : i32 to vector<16x1xi32>
    %c0_i32_10 = arith.constant 0 : i32
    %c31_i32 = arith.constant 31 : i32
    %17 = arith.addi %c0_i32_10, %c31_i32 : i32
    %c1_i32 = arith.constant 1 : i32
    %18 = scf.for %arg11 = %c0_i32_10 to %17 step %c1_i32 iter_args(%arg12 = %16) -> (vector<16x1xi32>)  : i32 {
      %c30_i32 = arith.constant 30 : i32
      %40 = arith.subi %c30_i32, %arg11 : i32
      %c1_i32_23 = arith.constant 1 : i32
      %41 = arith.shli %c1_i32_23, %40 : i32
      %42 = vector.broadcast %41 : i32 to vector<16x1xi32>
      %43 = arith.ori %arg12, %42 : vector<16x1xi32>
      %44 = vector.broadcast %43 : vector<16x1xi32> to vector<16x128xi32>
      %45 = arith.cmpi sge, %15, %44 : vector<16x128xi32>
      %46 = arith.extui %45 : vector<16x128xi1> to vector<16x128xi32>
      %cst_24 = arith.constant dense<0> : vector<16xi32>
      %47 = vector.multi_reduction <add>, %46, %cst_24 [1] : vector<16x128xi32> to vector<16xi32>
      %48 = vector.shape_cast %47 : vector<16xi32> to vector<16x1xi32>
      %c8_i32 = arith.constant 8 : i32
      %49 = vector.broadcast %c8_i32 : i32 to vector<16x1xi32>
      %50 = arith.cmpi sge, %48, %49 : vector<16x1xi32>
      %51 = arith.select %50, %43, %arg12 : vector<16x1xi1>, vector<16x1xi32>
      scf.yield %51 : vector<16x1xi32>
    }
    %c31_i32_11 = arith.constant 31 : i32
    %19 = tpu.bitcast %18 : vector<16x1xi32> -> vector<16x1xf32>
    %20 = vector.broadcast %19 : vector<16x1xf32> to vector<16x128xf32>
    %21 = arith.cmpf oge, %14, %20 : vector<16x128xf32>
    %cst_12 = arith.constant 0.000000e+00 : f32
    %22 = vector.broadcast %cst_12 : f32 to vector<16x128xf32>
    %23 = arith.select %21, %14, %22 : vector<16x128xi1>, vector<16x128xf32>
    %24 = arith.truncf %23 : vector<16x128xf32> to vector<16x128xbf16>
    %c0_13 = arith.constant 0 : index
    %c0_14 = arith.constant 0 : index
    %25 = vector.load %arg4[%c0_13, %c0_14] : memref<128x32xbf16, #tpu.memory_space<vmem>>, vector<128x32xbf16>
    %cst_15 = arith.constant dense<0.000000e+00> : vector<16x32xf32>
    %26 = tpu.matmul %24, %25, %cst_15 {dimension_numbers = #tpu.dot_dimension_numbers<[1], [0], [0], [1], [0, 0, 1, 1], [], []>} : vector<16x128xbf16>, vector<128x32xbf16>, vector<16x32xf32> -> vector<16x32xf32>
    %27 = vector.broadcast %4 : vector<1x32xf32> to vector<16x32xf32>
    %28 = arith.addf %26, %27 : vector<16x32xf32>
    %c0_16 = arith.constant 0 : index
    %c0_17 = arith.constant 0 : index
    %29 = vector.load %arg6[%c0_16, %c0_17] : memref<16x32xf32, #tpu.memory_space<vmem>>, vector<16x32xf32>
    tpu.vector_store %arg6[%c0_16, %c0_17], %28 {strides = array<i32>} : memref<16x32xf32, #tpu.memory_space<vmem>>, vector<16x32xf32>,
    %30 = arith.subf %28, %3 : vector<16x32xf32>
    %c3_i32 = arith.constant 3 : i32
    %31 = arith.cmpi slt, %arg0, %c3_i32 : i32
    %32 = arith.extui %31 : i1 to i32
    %c0_i32_18 = arith.constant 0 : i32
    %33 = arith.cmpi ne, %32, %c0_i32_18 : i32
    scf.if %33 {
      %c0_23 = arith.constant 0 : index
      %c0_24 = arith.constant 0 : index
      %40 = vector.load %arg8[%c0_23, %c0_24] : memref<1x32xf32, #tpu.memory_space<vmem>>, vector<1x32xf32>
      %cst_25 = arith.constant dense<0.000000e+00> : vector<32xf32>
      %41 = vector.multi_reduction <add>, %3, %cst_25 [0] : vector<16x32xf32> to vector<32xf32>
      %42 = vector.shape_cast %41 : vector<32xf32> to vector<1x32xf32>
      %43 = arith.addf %40, %42 : vector<1x32xf32>
      %c0_26 = arith.constant 0 : index
      %c0_27 = arith.constant 0 : index
      %44 = vector.load %arg8[%c0_26, %c0_27] : memref<1x32xf32, #tpu.memory_space<vmem>>, vector<1x32xf32>
      tpu.vector_store %arg8[%c0_26, %c0_27], %43 {strides = array<i32>} : memref<1x32xf32, #tpu.memory_space<vmem>>, vector<1x32xf32>,
      %c0_28 = arith.constant 0 : index
      %c0_29 = arith.constant 0 : index
      %45 = vector.load %arg9[%c0_28, %c0_29] : memref<1x32xf32, #tpu.memory_space<vmem>>, vector<1x32xf32>
      %46 = arith.mulf %30, %30 : vector<16x32xf32>
      %cst_30 = arith.constant dense<0.000000e+00> : vector<32xf32>
      %47 = vector.multi_reduction <add>, %46, %cst_30 [0] : vector<16x32xf32> to vector<32xf32>
      %48 = vector.shape_cast %47 : vector<32xf32> to vector<1x32xf32>
      %49 = arith.addf %45, %48 : vector<1x32xf32>
      %c0_31 = arith.constant 0 : index
      %c0_32 = arith.constant 0 : index
      %50 = vector.load %arg9[%c0_31, %c0_32] : memref<1x32xf32, #tpu.memory_space<vmem>>, vector<1x32xf32>
      tpu.vector_store %arg9[%c0_31, %c0_32], %49 {strides = array<i32>} : memref<1x32xf32, #tpu.memory_space<vmem>>, vector<1x32xf32>,
      %c0_33 = arith.constant 0 : index
      %c0_34 = arith.constant 0 : index
      %51 = vector.load %arg10[%c0_33, %c0_34] : memref<1x32xf32, #tpu.memory_space<vmem>>, vector<1x32xf32>
      %52 = arith.mulf %3, %3 : vector<16x32xf32>
      %cst_35 = arith.constant dense<0.000000e+00> : vector<32xf32>
      %53 = vector.multi_reduction <add>, %52, %cst_35 [0] : vector<16x32xf32> to vector<32xf32>
      %54 = vector.shape_cast %53 : vector<32xf32> to vector<1x32xf32>
      %55 = arith.addf %51, %54 : vector<1x32xf32>
      %c0_36 = arith.constant 0 : index
      %c0_37 = arith.constant 0 : index
      %56 = vector.load %arg10[%c0_36, %c0_37] : memref<1x32xf32, #tpu.memory_space<vmem>>, vector<1x32xf32>
      tpu.vector_store %arg10[%c0_36, %c0_37], %55 {strides = array<i32>} : memref<1x32xf32, #tpu.memory_space<vmem>>, vector<1x32xf32>,
    } else {
    }
    %c3_i32_19 = arith.constant 3 : i32
    %34 = arith.cmpi eq, %arg0, %c3_i32_19 : i32
    %35 = arith.extui %34 : i1 to i32
    %c0_i32_20 = arith.constant 0 : i32
    %36 = arith.cmpi ne, %35, %c0_i32_20 : i32
    scf.if %36 {
      %c16_i32 = arith.constant 16 : i32
      %40 = arith.muli %arg0, %c16_i32 : i32
      %41 = tpu.iota {dimensions = array<i32: 0>} : vector<16x1xi32>
      %42 = vector.broadcast %40 : i32 to vector<16x1xi32>
      %43 = arith.addi %42, %41 : vector<16x1xi32>
      %c50_i32 = arith.constant 50 : i32
      %44 = vector.broadcast %c50_i32 : i32 to vector<16x1xi32>
      %45 = arith.cmpi slt, %43, %44 : vector<16x1xi32>
      %cst_23 = arith.constant 0.000000e+00 : f32
      %46 = vector.shape_cast %45 : vector<16x1xi1> to vector<16x1xi1>
      %47 = vector.broadcast %46 : vector<16x1xi1> to vector<16x32xi1>
      %48 = vector.broadcast %cst_23 : f32 to vector<16x32xf32>
      %49 = arith.select %47, %3, %48 : vector<16x32xi1>, vector<16x32xf32>
      %cst_24 = arith.constant 0.000000e+00 : f32
      %50 = vector.shape_cast %45 : vector<16x1xi1> to vector<16x1xi1>
      %51 = vector.broadcast %50 : vector<16x1xi1> to vector<16x32xi1>
      %52 = vector.broadcast %cst_24 : f32 to vector<16x32xf32>
      %53 = arith.select %51, %30, %52 : vector<16x32xi1>, vector<16x32xf32>
      %c0_25 = arith.constant 0 : index
      %c0_26 = arith.constant 0 : index
      %54 = vector.load %arg8[%c0_25, %c0_26] : memref<1x32xf32, #tpu.memory_space<vmem>>, vector<1x32xf32>
      %cst_27 = arith.constant dense<0.000000e+00> : vector<32xf32>
      %55 = vector.multi_reduction <add>, %49, %cst_27 [0] : vector<16x32xf32> to vector<32xf32>
      %56 = vector.shape_cast %55 : vector<32xf32> to vector<1x32xf32>
      %57 = arith.addf %54, %56 : vector<1x32xf32>
      %c0_28 = arith.constant 0 : index
      %c0_29 = arith.constant 0 : index
      %58 = vector.load %arg8[%c0_28, %c0_29] : memref<1x32xf32, #tpu.memory_space<vmem>>, vector<1x32xf32>
      tpu.vector_store %arg8[%c0_28, %c0_29], %57 {strides = array<i32>} : memref<1x32xf32, #tpu.memory_space<vmem>>, vector<1x32xf32>,
      %c0_30 = arith.constant 0 : index
      %c0_31 = arith.constant 0 : index
      %59 = vector.load %arg9[%c0_30, %c0_31] : memref<1x32xf32, #tpu.memory_space<vmem>>, vector<1x32xf32>
      %60 = arith.mulf %53, %53 : vector<16x32xf32>
      %cst_32 = arith.constant dense<0.000000e+00> : vector<32xf32>
      %61 = vector.multi_reduction <add>, %60, %cst_32 [0] : vector<16x32xf32> to vector<32xf32>
      %62 = vector.shape_cast %61 : vector<32xf32> to vector<1x32xf32>
      %63 = arith.addf %59, %62 : vector<1x32xf32>
      %c0_33 = arith.constant 0 : index
      %c0_34 = arith.constant 0 : index
      %64 = vector.load %arg9[%c0_33, %c0_34] : memref<1x32xf32, #tpu.memory_space<vmem>>, vector<1x32xf32>
      tpu.vector_store %arg9[%c0_33, %c0_34], %63 {strides = array<i32>} : memref<1x32xf32, #tpu.memory_space<vmem>>, vector<1x32xf32>,
      %c0_35 = arith.constant 0 : index
      %c0_36 = arith.constant 0 : index
      %65 = vector.load %arg10[%c0_35, %c0_36] : memref<1x32xf32, #tpu.memory_space<vmem>>, vector<1x32xf32>
      %66 = arith.mulf %49, %49 : vector<16x32xf32>
      %cst_37 = arith.constant dense<0.000000e+00> : vector<32xf32>
      %67 = vector.multi_reduction <add>, %66, %cst_37 [0] : vector<16x32xf32> to vector<32xf32>
      %68 = vector.shape_cast %67 : vector<32xf32> to vector<1x32xf32>
      %69 = arith.addf %65, %68 : vector<1x32xf32>
      %c0_38 = arith.constant 0 : index
      %c0_39 = arith.constant 0 : index
      %70 = vector.load %arg10[%c0_38, %c0_39] : memref<1x32xf32, #tpu.memory_space<vmem>>, vector<1x32xf32>
      tpu.vector_store %arg10[%c0_38, %c0_39], %69 {strides = array<i32>} : memref<1x32xf32, #tpu.memory_space<vmem>>, vector<1x32xf32>,
    } else {
    }
    %c3_i32_21 = arith.constant 3 : i32
    %37 = arith.cmpi eq, %arg0, %c3_i32_21 : i32
    %38 = arith.extui %37 : i1 to i32
    %c0_i32_22 = arith.constant 0 : i32
    %39 = arith.cmpi ne, %38, %c0_i32_22 : i32
    scf.if %39 {
      %c0_23 = arith.constant 0 : index
      %c0_24 = arith.constant 0 : index
      %40 = vector.load %arg8[%c0_23, %c0_24] : memref<1x32xf32, #tpu.memory_space<vmem>>, vector<1x32xf32>
      %c0_25 = arith.constant 0 : index
      %c0_26 = arith.constant 0 : index
      %41 = vector.load %arg10[%c0_25, %c0_26] : memref<1x32xf32, #tpu.memory_space<vmem>>, vector<1x32xf32>
      %42 = arith.mulf %40, %40 : vector<1x32xf32>
      %cst_27 = arith.constant 2.000000e-02 : f32
      %43 = vector.broadcast %cst_27 : f32 to vector<1x32xf32>
      %44 = arith.mulf %42, %43 : vector<1x32xf32>
      %45 = arith.subf %41, %44 : vector<1x32xf32>
      %c0_28 = arith.constant 0 : index
      %c0_29 = arith.constant 0 : index
      %46 = vector.load %arg9[%c0_28, %c0_29] : memref<1x32xf32, #tpu.memory_space<vmem>>, vector<1x32xf32>
      %cst_30 = arith.constant dense<0.000000e+00> : vector<1xf32>
      %47 = vector.multi_reduction <add>, %46, %cst_30 [1] : vector<1x32xf32> to vector<1xf32>
      %48 = vector.shape_cast %47 : vector<1xf32> to vector<1x1xf32>
      %cst_31 = arith.constant dense<0.000000e+00> : vector<1xf32>
      %49 = vector.multi_reduction <add>, %45, %cst_31 [1] : vector<1x32xf32> to vector<1xf32>
      %50 = vector.shape_cast %49 : vector<1xf32> to vector<1x1xf32>
      %51 = arith.divf %48, %50 : vector<1x1xf32>
      %c0_32 = arith.constant 0 : index
      %c0_33 = arith.constant 0 : index
      %52 = vector.load %arg7[%c0_32, %c0_33] : memref<1x1xf32, #tpu.memory_space<vmem>>, vector<1x1xf32>
      tpu.vector_store %arg7[%c0_32, %c0_33], %51 {strides = array<i32>} : memref<1x1xf32, #tpu.memory_space<vmem>>, vector<1x1xf32>,
    } else {
    }
    return
  }
  func.func @transform_0(%arg0: i32) -> (i32, i32) {
    %c0_i32 = arith.constant 0 : i32
    %c0_i32_0 = arith.constant 0 : i32
    return %arg0, %c0_i32 : i32, i32
  }
  func.func @transform_1(%arg0: i32) -> (i32, i32) {
    %c0_i32 = arith.constant 0 : i32
    %c0_i32_0 = arith.constant 0 : i32
    %c0_i32_1 = arith.constant 0 : i32
    return %c0_i32, %c0_i32_0 : i32, i32
  }
  func.func @transform_2(%arg0: i32) -> (i32, i32) {
    %c0_i32 = arith.constant 0 : i32
    %c0_i32_0 = arith.constant 0 : i32
    %c0_i32_1 = arith.constant 0 : i32
    return %c0_i32, %c0_i32_0 : i32, i32
  }
  func.func @transform_3(%arg0: i32) -> (i32, i32) {
    %c0_i32 = arith.constant 0 : i32
    %c0_i32_0 = arith.constant 0 : i32
    %c0_i32_1 = arith.constant 0 : i32
    return %c0_i32, %c0_i32_0 : i32, i32
  }
  func.func @transform_4(%arg0: i32) -> (i32, i32) {
    %c0_i32 = arith.constant 0 : i32
    %c0_i32_0 = arith.constant 0 : i32
    %c0_i32_1 = arith.constant 0 : i32
    return %c0_i32, %c0_i32_0 : i32, i32
  }
  func.func @transform_5(%arg0: i32) -> (i32, i32) {
    %c0_i32 = arith.constant 0 : i32
    %c0_i32_0 = arith.constant 0 : i32
    return %arg0, %c0_i32 : i32, i32
  }
  func.func @transform_6(%arg0: i32) -> (i32, i32) {
    %c0_i32 = arith.constant 0 : i32
    %c0_i32_0 = arith.constant 0 : i32
    %c0_i32_1 = arith.constant 0 : i32
    return %c0_i32, %c0_i32_0 : i32, i32
  }
}

module attributes {stable_mosaic.version = 11 : i64} {
  func.func @_sae_kernel(%arg0: i32, %arg1: memref<16x32xf32, #tpu.memory_space<vmem>>, %arg2: memref<32x128xbf16, #tpu.memory_space<vmem>>, %arg3: memref<1x128xf32, #tpu.memory_space<vmem>>, %arg4: memref<128x32xbf16, #tpu.memory_space<vmem>>, %arg5: memref<1x32xf32, #tpu.memory_space<vmem>>, %arg6: memref<16x32xf32, #tpu.memory_space<vmem>>, %arg7: memref<1x1xf32, #tpu.memory_space<vmem>>, %arg8: memref<1x32xf32, #tpu.memory_space<vmem>>, %arg9: memref<1x32xf32, #tpu.memory_space<vmem>>, %arg10: memref<1x32xf32, #tpu.memory_space<vmem>>) attributes {dimension_semantics = [#tpu.dimension_semantics<arbitrary>], iteration_bounds = array<i64: 4>, scalar_prefetch = 0 : i64, scratch_operands = 3 : i64, tpu.core_type = #tpu.core_type<tc>, window_params = [{transform_indices = @transform_0, window_bounds = array<i64: 16, 32>}, {pipeline_mode = #tpu.pipeline_mode<synchronous>, transform_indices = @transform_1, window_bounds = array<i64: 32, 128>}, {pipeline_mode = #tpu.pipeline_mode<synchronous>, transform_indices = @transform_2, window_bounds = array<i64: 1, 128>}, {pipeline_mode = #tpu.pipeline_mode<synchronous>, transform_indices = @transform_3, window_bounds = array<i64: 128, 32>}, {pipeline_mode = #tpu.pipeline_mode<synchronous>, transform_indices = @transform_4, window_bounds = array<i64: 1, 32>}, {transform_indices = @transform_5, window_bounds = array<i64: 16, 32>}, {pipeline_mode = #tpu.pipeline_mode<synchronous>, transform_indices = @transform_6, window_bounds = array<i64: 1, 1>}]} {
    %c0_i32 = arith.constant 0 : i32
    %0 = arith.cmpi eq, %arg0, %c0_i32 : i32
    %1 = arith.extui %0 : i1 to i32
    %c0_i32_0 = arith.constant 0 : i32
    %2 = arith.cmpi ne, %1, %c0_i32_0 : i32
    scf.if %2 {
      %cst_23 = arith.constant 0.000000e+00 : f32
      %40 = vector.broadcast %cst_23 : f32 to vector<1x32xf32>
      %c0_24 = arith.constant 0 : index
      %c0_25 = arith.constant 0 : index
      %41 = vector.load %arg8[%c0_24, %c0_25] : memref<1x32xf32, #tpu.memory_space<vmem>>, vector<1x32xf32>
      tpu.vector_store %arg8[%c0_24, %c0_25], %40 {strides = array<i32>} : memref<1x32xf32, #tpu.memory_space<vmem>>, vector<1x32xf32>,
      %cst_26 = arith.constant 0.000000e+00 : f32
      %42 = vector.broadcast %cst_26 : f32 to vector<1x32xf32>
      %c0_27 = arith.constant 0 : index
      %c0_28 = arith.constant 0 : index
      %43 = vector.load %arg9[%c0_27, %c0_28] : memref<1x32xf32, #tpu.memory_space<vmem>>, vector<1x32xf32>
      tpu.vector_store %arg9[%c0_27, %c0_28], %42 {strides = array<i32>} : memref<1x32xf32, #tpu.memory_space<vmem>>, vector<1x32xf32>,
      %cst_29 = arith.constant 0.000000e+00 : f32
      %44 = vector.broadcast %cst_29 : f32 to vector<1x32xf32>
      %c0_30 = arith.constant 0 : index
      %c0_31 = arith.constant 0 : index
      %45 = vector.load %arg10[%c0_30, %c0_31] : memref<1x32xf32, #tpu.memory_space<vmem>>, vector<1x32xf32>
      tpu.vector_store %arg10[%c0_30, %c0_31], %44 {strides = array<i32>} : memref<1x32xf32, #tpu.memory_space<vmem>>, vector<1x32xf32>,
    } else {
    }
    %c0 = arith.constant 0 : index
    %c0_1 = arith.constant 0 : index
    %3 = vector.load %arg1[%c0, %c0_1] : memref<16x32xf32, #tpu.memory_space<vmem>>, vector<16x32xf32>
    %c0_2 = arith.constant 0 : index
    %c0_3 = arith.constant 0 : index
    %4 = vector.load %arg5[%c0_2, %c0_3] : memref<1x32xf32, #tpu.memory_space<vmem>>, vector<1x32xf32>
    %5 = vector.broadcast %4 : vector<1x32xf32> to vector<16x32xf32>
    %6 = arith.subf %3, %5 : vector<16x32xf32>
    %7 = arith.truncf %6 : vector<16x32xf32> to vector<16x32xbf16>
    %c0_4 = arith.constant 0 : index
    %c0_5 = arith.constant 0 : index
    %8 = vector.load %arg2[%c0_4, %c0_5] : memref<32x128xbf16, #tpu.memory_space<vmem>>, vector<32x128xbf16>
    %cst = arith.constant dense<0.000000e+00> : vector<16x128xf32>
    %9 = tpu.matmul %7, %8, %cst {dimension_numbers = #tpu.dot_dimension_numbers<[1], [0], [0], [1], [0, 0, 1, 1], [], []>} : vector<16x32xbf16>, vector<32x128xbf16>, vector<16x128xf32> -> vector<16x128xf32>
    %c0_6 = arith.constant 0 : index
    %c0_7 = arith.constant 0 : index
    %10 = vector.load %arg3[%c0_6, %c0_7] : memref<1x128xf32, #tpu.memory_space<vmem>>, vector<1x128xf32>
    %11 = vector.broadcast %10 : vector<1x128xf32> to vector<16x128xf32>
    %12 = arith.addf %9, %11 : vector<16x128xf32>
    %cst_8 = arith.constant 0.000000e+00 : f32
    %13 = vector.broadcast %cst_8 : f32 to vector<16x128xf32>
    %14 = arith.maximumf %12, %13 : vector<16x128xf32>
    %15 = tpu.bitcast %14 : vector<16x128xf32> -> vector<16x128xi32>
    %c0_i32_9 = arith.constant 0 : i32
    %16 = vector.broadcast %c0_i32_9 : i32 to vector<16x1xi32>
    %c0_i32_10 = arith.constant 0 : i32
    %c31_i32 = arith.constant 31 : i32
    %17 = arith.addi %c0_i32_10, %c31_i32 : i32
    %c1_i32 = arith.constant 1 : i32
    %18 = scf.for %arg11 = %c0_i32_10 to %17 step %c1_i32 iter_args(%arg12 = %16) -> (vector<16x1xi32>)  : i32 {
      %c30_i32 = arith.constant 30 : i32
      %40 = arith.subi %c30_i32, %arg11 : i32
      %c1_i32_23 = arith.constant 1 : i32
      %41 = arith.shli %c1_i32_23, %40 : i32
      %42 = vector.broadcast %41 : i32 to vector<16x1xi32>
      %43 = arith.ori %arg12, %42 : vector<16x1xi32>
      %44 = vector.broadcast %43 : vector<16x1xi32> to vector<16x128xi32>
      %45 = arith.cmpi sge, %15, %44 : vector<16x128xi32>
      %46 = arith.extui %45 : vector<16x128xi1> to vector<16x128xi32>
      %cst_24 = arith.constant dense<0> : vector<16xi32>
      %47 = vector.multi_reduction <add>, %46, %cst_24 [1] : vector<16x128xi32> to vector<16xi32>
      %48 = vector.shape_cast %47 : vector<16xi32> to vector<16x1xi32>
      %c8_i32 = arith.constant 8 : i32
      %49 = vector.broadcast %c8_i32 : i32 to vector<16x1xi32>
      %50 = arith.cmpi sge, %48, %49 : vector<16x1xi32>
      %51 = arith.select %50, %43, %arg12 : vector<16x1xi1>, vector<16x1xi32>
      scf.yield %51 : vector<16x1xi32>
    }
    %c31_i32_11 = arith.constant 31 : i32
    %19 = tpu.bitcast %18 : vector<16x1xi32> -> vector<16x1xf32>
    %20 = vector.broadcast %19 : vector<16x1xf32> to vector<16x128xf32>
    %21 = arith.cmpf oge, %14, %20 : vector<16x128xf32>
    %cst_12 = arith.constant 0.000000e+00 : f32
    %22 = vector.broadcast %cst_12 : f32 to vector<16x128xf32>
    %23 = arith.select %21, %14, %22 : vector<16x128xi1>, vector<16x128xf32>
    %24 = arith.truncf %23 : vector<16x128xf32> to vector<16x128xbf16>
    %c0_13 = arith.constant 0 : index
    %c0_14 = arith.constant 0 : index
    %25 = vector.load %arg4[%c0_13, %c0_14] : memref<128x32xbf16, #tpu.memory_space<vmem>>, vector<128x32xbf16>
    %cst_15 = arith.constant dense<0.000000e+00> : vector<16x32xf32>
    %26 = tpu.matmul %24, %25, %cst_15 {dimension_numbers = #tpu.dot_dimension_numbers<[1], [0], [0], [1], [0, 0, 1, 1], [], []>} : vector<16x128xbf16>, vector<128x32xbf16>, vector<16x32xf32> -> vector<16x32xf32>
    %27 = vector.broadcast %4 : vector<1x32xf32> to vector<16x32xf32>
    %28 = arith.addf %26, %27 : vector<16x32xf32>
    %c0_16 = arith.constant 0 : index
    %c0_17 = arith.constant 0 : index
    %29 = vector.load %arg6[%c0_16, %c0_17] : memref<16x32xf32, #tpu.memory_space<vmem>>, vector<16x32xf32>
    tpu.vector_store %arg6[%c0_16, %c0_17], %28 {strides = array<i32>} : memref<16x32xf32, #tpu.memory_space<vmem>>, vector<16x32xf32>,
    %30 = arith.subf %28, %3 : vector<16x32xf32>
    %c3_i32 = arith.constant 3 : i32
    %31 = arith.cmpi slt, %arg0, %c3_i32 : i32
    %32 = arith.extui %31 : i1 to i32
    %c0_i32_18 = arith.constant 0 : i32
    %33 = arith.cmpi ne, %32, %c0_i32_18 : i32
    scf.if %33 {
      %c0_23 = arith.constant 0 : index
      %c0_24 = arith.constant 0 : index
      %40 = vector.load %arg8[%c0_23, %c0_24] : memref<1x32xf32, #tpu.memory_space<vmem>>, vector<1x32xf32>
      %cst_25 = arith.constant dense<0.000000e+00> : vector<32xf32>
      %41 = vector.multi_reduction <add>, %3, %cst_25 [0] : vector<16x32xf32> to vector<32xf32>
      %42 = vector.shape_cast %41 : vector<32xf32> to vector<1x32xf32>
      %43 = arith.addf %40, %42 : vector<1x32xf32>
      %c0_26 = arith.constant 0 : index
      %c0_27 = arith.constant 0 : index
      %44 = vector.load %arg8[%c0_26, %c0_27] : memref<1x32xf32, #tpu.memory_space<vmem>>, vector<1x32xf32>
      tpu.vector_store %arg8[%c0_26, %c0_27], %43 {strides = array<i32>} : memref<1x32xf32, #tpu.memory_space<vmem>>, vector<1x32xf32>,
      %c0_28 = arith.constant 0 : index
      %c0_29 = arith.constant 0 : index
      %45 = vector.load %arg9[%c0_28, %c0_29] : memref<1x32xf32, #tpu.memory_space<vmem>>, vector<1x32xf32>
      %46 = arith.mulf %30, %30 : vector<16x32xf32>
      %cst_30 = arith.constant dense<0.000000e+00> : vector<32xf32>
      %47 = vector.multi_reduction <add>, %46, %cst_30 [0] : vector<16x32xf32> to vector<32xf32>
      %48 = vector.shape_cast %47 : vector<32xf32> to vector<1x32xf32>
      %49 = arith.addf %45, %48 : vector<1x32xf32>
      %c0_31 = arith.constant 0 : index
      %c0_32 = arith.constant 0 : index
      %50 = vector.load %arg9[%c0_31, %c0_32] : memref<1x32xf32, #tpu.memory_space<vmem>>, vector<1x32xf32>
      tpu.vector_store %arg9[%c0_31, %c0_32], %49 {strides = array<i32>} : memref<1x32xf32, #tpu.memory_space<vmem>>, vector<1x32xf32>,
      %c0_33 = arith.constant 0 : index
      %c0_34 = arith.constant 0 : index
      %51 = vector.load %arg10[%c0_33, %c0_34] : memref<1x32xf32, #tpu.memory_space<vmem>>, vector<1x32xf32>
      %52 = arith.mulf %3, %3 : vector<16x32xf32>
      %cst_35 = arith.constant dense<0.000000e+00> : vector<32xf32>
      %53 = vector.multi_reduction <add>, %52, %cst_35 [0] : vector<16x32xf32> to vector<32xf32>
      %54 = vector.shape_cast %53 : vector<32xf32> to vector<1x32xf32>
      %55 = arith.addf %51, %54 : vector<1x32xf32>
      %c0_36 = arith.constant 0 : index
      %c0_37 = arith.constant 0 : index
      %56 = vector.load %arg10[%c0_36, %c0_37] : memref<1x32xf32, #tpu.memory_space<vmem>>, vector<1x32xf32>
      tpu.vector_store %arg10[%c0_36, %c0_37], %55 {strides = array<i32>} : memref<1x32xf32, #tpu.memory_space<vmem>>, vector<1x32xf32>,
    } else {
    }
    %c3_i32_19 = arith.constant 3 : i32
    %34 = arith.cmpi eq, %arg0, %c3_i32_19 : i32
    %35 = arith.extui %34 : i1 to i32
    %c0_i32_20 = arith.constant 0 : i32
    %36 = arith.cmpi ne, %35, %c0_i32_20 : i32
    scf.if %36 {
      %c16_i32 = arith.constant 16 : i32
      %40 = arith.muli %arg0, %c16_i32 : i32
      %41 = tpu.iota {dimensions = array<i32: 0>} : vector<16x1xi32>
      %42 = vector.broadcast %40 : i32 to vector<16x1xi32>
      %43 = arith.addi %42, %41 : vector<16x1xi32>
      %c50_i32 = arith.constant 50 : i32
      %44 = vector.broadcast %c50_i32 : i32 to vector<16x1xi32>
      %45 = arith.cmpi slt, %43, %44 : vector<16x1xi32>
      %cst_23 = arith.constant 0.000000e+00 : f32
      %46 = vector.shape_cast %45 : vector<16x1xi1> to vector<16x1xi1>
      %47 = vector.broadcast %46 : vector<16x1xi1> to vector<16x32xi1>
      %48 = vector.broadcast %cst_23 : f32 to vector<16x32xf32>
      %49 = arith.select %47, %3, %48 : vector<16x32xi1>, vector<16x32xf32>
      %cst_24 = arith.constant 0.000000e+00 : f32
      %50 = vector.shape_cast %45 : vector<16x1xi1> to vector<16x1xi1>
      %51 = vector.broadcast %50 : vector<16x1xi1> to vector<16x32xi1>
      %52 = vector.broadcast %cst_24 : f32 to vector<16x32xf32>
      %53 = arith.select %51, %30, %52 : vector<16x32xi1>, vector<16x32xf32>
      %c0_25 = arith.constant 0 : index
      %c0_26 = arith.constant 0 : index
      %54 = vector.load %arg8[%c0_25, %c0_26] : memref<1x32xf32, #tpu.memory_space<vmem>>, vector<1x32xf32>
      %cst_27 = arith.constant dense<0.000000e+00> : vector<32xf32>
      %55 = vector.multi_reduction <add>, %49, %cst_27 [0] : vector<16x32xf32> to vector<32xf32>
      %56 = vector.shape_cast %55 : vector<32xf32> to vector<1x32xf32>
      %57 = arith.addf %54, %56 : vector<1x32xf32>
      %c0_28 = arith.constant 0 : index
      %c0_29 = arith.constant 0 : index
      %58 = vector.load %arg8[%c0_28, %c0_29] : memref<1x32xf32, #tpu.memory_space<vmem>>, vector<1x32xf32>
      tpu.vector_store %arg8[%c0_28, %c0_29], %57 {strides = array<i32>} : memref<1x32xf32, #tpu.memory_space<vmem>>, vector<1x32xf32>,
      %c0_30 = arith.constant 0 : index
      %c0_31 = arith.constant 0 : index
      %59 = vector.load %arg9[%c0_30, %c0_31] : memref<1x32xf32, #tpu.memory_space<vmem>>, vector<1x32xf32>
      %60 = arith.mulf %53, %53 : vector<16x32xf32>
      %cst_32 = arith.constant dense<0.000000e+00> : vector<32xf32>
      %61 = vector.multi_reduction <add>, %60, %cst_32 [0] : vector<16x32xf32> to vector<32xf32>
      %62 = vector.shape_cast %61 : vector<32xf32> to vector<1x32xf32>
      %63 = arith.addf %59, %62 : vector<1x32xf32>
      %c0_33 = arith.constant 0 : index
      %c0_34 = arith.constant 0 : index
      %64 = vector.load %arg9[%c0_33, %c0_34] : memref<1x32xf32, #tpu.memory_space<vmem>>, vector<1x32xf32>
      tpu.vector_store %arg9[%c0_33, %c0_34], %63 {strides = array<i32>} : memref<1x32xf32, #tpu.memory_space<vmem>>, vector<1x32xf32>,
      %c0_35 = arith.constant 0 : index
      %c0_36 = arith.constant 0 : index
      %65 = vector.load %arg10[%c0_35, %c0_36] : memref<1x32xf32, #tpu.memory_space<vmem>>, vector<1x32xf32>
      %66 = arith.mulf %49, %49 : vector<16x32xf32>
      %cst_37 = arith.constant dense<0.000000e+00> : vector<32xf32>
      %67 = vector.multi_reduction <add>, %66, %cst_37 [0] : vector<16x32xf32> to vector<32xf32>
      %68 = vector.shape_cast %67 : vector<32xf32> to vector<1x32xf32>
      %69 = arith.addf %65, %68 : vector<1x32xf32>
      %c0_38 = arith.constant 0 : index
      %c0_39 = arith.constant 0 : index
      %70 = vector.load %arg10[%c0_38, %c0_39] : memref<1x32xf32, #tpu.memory_space<vmem>>, vector<1x32xf32>
      tpu.vector_store %arg10[%c0_38, %c0_39], %69 {strides = array<i32>} : memref<1x32xf32, #tpu.memory_space<vmem>>, vector<1x32xf32>,
    } else {
    }
    %c3_i32_21 = arith.constant 3 : i32
    %37 = arith.cmpi eq, %arg0, %c3_i32_21 : i32
    %38 = arith.extui %37 : i1 to i32
    %c0_i32_22 = arith.constant 0 : i32
    %39 = arith.cmpi ne, %38, %c0_i32_22 : i32
    scf.if %39 {
      %c0_23 = arith.constant 0 : index
      %c0_24 = arith.constant 0 : index
      %40 = vector.load %arg8[%c0_23, %c0_24] : memref<1x32xf32, #tpu.memory_space<vmem>>, vector<1x32xf32>
      %c0_25 = arith.constant 0 : index
      %c0_26 = arith.constant 0 : index
      %41 = vector.load %arg10[%c0_25, %c0_26] : memref<1x32xf32, #tpu.memory_space<vmem>>, vector<1x32xf32>
      %42 = arith.mulf %40, %40 : vector<1x32xf32>
      %cst_27 = arith.constant 2.000000e-02 : f32
      %43 = vector.broadcast %cst_27 : f32 to vector<1x32xf32>
      %44 = arith.mulf %42, %43 : vector<1x32xf32>
      %45 = arith.subf %41, %44 : vector<1x32xf32>
      %c0_28 = arith.constant 0 : index
      %c0_29 = arith.constant 0 : index
      %46 = vector.load %arg9[%c0_28, %c0_29] : memref<1x32xf32, #tpu.memory_space<vmem>>, vector<1x32xf32>
      %cst_30 = arith.constant dense<0.000000e+00> : vector<1xf32>
      %47 = vector.multi_reduction <add>, %46, %cst_30 [1] : vector<1x32xf32> to vector<1xf32>
      %48 = vector.shape_cast %47 : vector<1xf32> to vector<1x1xf32>
      %cst_31 = arith.constant dense<0.000000e+00> : vector<1xf32>
      %49 = vector.multi_reduction <add>, %45, %cst_31 [1] : vector<1x32xf32> to vector<1xf32>
      %50 = vector.shape_cast %49 : vector<1xf32> to vector<1x1xf32>
      %51 = arith.divf %48, %50 : vector<1x1xf32>
      %c0_32 = arith.constant 0 : index
      %c0_33 = arith.constant 0 : index
      %52 = vector.load %arg7[%c0_32, %c0_33] : memref<1x1xf32, #tpu.memory_space<vmem>>, vector<1x1xf32>
      tpu.vector_store %arg7[%c0_32, %c0_33], %51 {strides = array<i32>} : memref<1x1xf32, #tpu.memory_space<vmem>>, vector<1x1xf32>,
    } else {
    }
    return
  }
  func.func @transform_0(%arg0: i32) -> (i32, i32) {
    %c0_i32 = arith.constant 0 : i32
    %c0_i32_0 = arith.constant 0 : i32
    return %arg0, %c0_i32 : i32, i32
  }
  func.func @transform_1(%arg0: i32) -> (i32, i32) {
    %c0_i32 = arith.constant 0 : i32
    %c0_i32_0 = arith.constant 0 : i32
    %c0_i32_1 = arith.constant 0 : i32
    return %c0_i32, %c0_i32_0 : i32, i32
  }
  func.func @transform_2(%arg0: i32) -> (i32, i32) {
    %c0_i32 = arith.constant 0 : i32
    %c0_i32_0 = arith.constant 0 : i32
    %c0_i32_1 = arith.constant 0 : i32
    return %c0_i32, %c0_i32_0 : i32, i32
  }
  func.func @transform_3(%arg0: i32) -> (i32, i32) {
    %c0_i32 = arith.constant 0 : i32
    %c0_i32_0 = arith.constant 0 : i32
    %c0_i32_1 = arith.constant 0 : i32
    return %c0_i32, %c0_i32_0 : i32, i32
  }
  func.func @transform_4(%arg0: i32) -> (i32, i32) {
    %c0_i32 = arith.constant 0 : i32
    %c0_i32_0 = arith.constant 0 : i32
    %c0_i32_1 = arith.constant 0 : i32
    return %c0_i32, %c0_i32_0 : i32, i32
  }
  func.func @transform_5(%arg0: i32) -> (i32, i32) {
    %c0_i32 = arith.constant 0 : i32
    %c0_i32_0 = arith.constant 0 : i32
    return %arg0, %c0_i32 : i32, i32
  }
  func.func @transform_6(%arg0: i32) -> (i32, i32) {
    %c0_i32 = arith.constant 0 : i32
    %c0_i32_0 = arith.constant 0 : i32
    %c0_i32_1 = arith.constant 0 : i32
    return %c0_i32, %c0_i32_0 : i32, i32
  }
}

</mosaic_0001>

<llo_original>
// kernel: tpu_custom_call.1
$region0: #{tpu_custom_call.1}
  #allocation0 [shape = 'u32[]', space=smem, size = 0x4, offset = 0x4, fixed_abs, tag = 'smem constant byte address 0x4 - core index']
  #allocation1 [shape = 'u32[72,128]{1,0:T(1,128)}', space=vmem, size = 0x9000, scoped, tag = 'internal scratch']
  #allocation2 [shape = 'f32[1,32]{1,0:T(1,128)}', space=vmem, size = 0x200, scoped, tag = 'scratch operand']
  #allocation3 [shape = 'f32[1,32]{1,0:T(1,128)}', space=vmem, size = 0x200, scoped, tag = 'scratch operand']
  #allocation4 [shape = 'f32[1,32]{1,0:T(1,128)}', space=vmem, size = 0x200, scoped, tag = 'scratch operand']
  %s0 = inlined_call_operand.vmem [shape: f32[64,32], index: 0, kind: input, shape index: {}]
  %s1 = inlined_call_operand.vmem [shape: bf16[32,128], index: 1, kind: input, shape index: {}]
  %s2 = inlined_call_operand.vmem [shape: f32[1,128], index: 2, kind: input, shape index: {}]
  %s3 = inlined_call_operand.vmem [shape: bf16[128,32], index: 3, kind: input, shape index: {}]
  %s4 = inlined_call_operand.vmem [shape: f32[1,32], index: 4, kind: input, shape index: {}]
  %s5 = inlined_call_operand.vmem [shape: f32[64,32], index: 5, kind: output, shape index: {0}]
  %s6 = inlined_call_operand.hbm [shape: f32[1,1], index: 6, kind: output, shape index: {1}]
  %7 = xla_tuple %s5, %s6
  %s8 = sld [smem:[#allocation0]]
  $region80: #{tpu_custom_call.1} parent=0
    _
  %s10 = ssub.s32 1, %s8
  %s11 = scalar_select 0, %s10, %s8
  $region1: #{tpu_custom_call.1} parent=0
    #allocation5 [shape = 'u8[512]{0}', space=vmem, size = 0x400, scoped, tag = 'output window, operand 1, single buffered']
    #allocation6 [shape = 's32[2]{0}', space=sflag, size = 0x8, scoped, tag = 'scoped memory for tpu_custom_call.1']
    %12 = vsyncpa [#allocation6], 0
    loop: start=0, step=1, limit=6
    $region2: #{tpu_custom_call.1} parent=1 // loop_pre_header
      _
    $region3: #{tpu_custom_call.1} parent=1 // loop_header
      %s14 = sphi 0, %s18
      %p15 = scmp.ge.s32.totalorder %s14, 6
      %s24 = sphi 0, %s26
      %s27 = sphi 0, %s24
      %s28 = sphi 0, %s27
      %s44 = sphi 0, %s28
      %s48 = sphi 0, %s48
      %s50 = sphi 0, %s48
      %s51 = sphi 0, %s50
      %s65 = sphi 0, %s51
      %s69 = sphi 0, %s69
      %s71 = sphi 0, %s69
      %s72 = sphi 0, %s71
      %s86 = sphi 0, %s72
      %s90 = sphi 0, %s90
      %s92 = sphi 0, %s90
      %s93 = sphi 0, %s92
      %s107 = sphi 0, %s93
      %s111 = sphi 0, %s111
      %s113 = sphi 0, %s111
      %s114 = sphi 0, %s113
      %s128 = sphi 0, %s114
      %s134 = sphi 0, %s136
      %s137 = sphi 0, %s134
      %s138 = sphi 0, %s137
      %s154 = sphi 0, %s138
      %s158 = sphi 0, %s158
      %s160 = sphi 0, %s158
      %s161 = sphi 0, %s160
      %s175 = sphi 0, %s161
    $region4: #{tpu_custom_call.1} parent=1 // loop_header_branch
      %17 = sbr.rel (%p15) target = $region8
    $region5: #{tpu_custom_call.1} parent=1 // loop_body
      %s19 = ssub.s32 %s14, 1
      %s20 = ssub.s32 %s14, 2
      %s21 = sadd.s32 %s14, 1
      %s22 = ssub.s32 %s14, %s21
      %p23 = scmp.eq.s32.totalorder %s22, 0
      %s25 = sadd.s32 %s24, 1
      %s26 = scalar_select %p23, %s24, %s25
      %p29 = pneg %p23
      %p30 = scmp.eq.s32.totalorder %s14, 3
      %p31 = por %p29, %p30
      %p32 = scmp.ne.s32.totalorder %s24, %s27
      %p33 = scmp.eq.s32.totalorder %s14, 0
      %p34 = por %p32, %p33
      %p35 = scmp.ne.s32.totalorder %s24, %s27
      %p36 = scmp.eq.s32.totalorder %s19, 3
      %p37 = por %p35, %p36
      %p38 = scmp.ne.s32.totalorder %s27, %s28
      %p39 = scmp.eq.s32.totalorder %s19, 0
      %p40 = por %p38, %p39
      %p41 = scmp.ne.s32.totalorder %s27, %s28
      %p42 = scmp.eq.s32.totalorder %s20, 3
      %p43 = por %p41, %p42
      %p45 = scmp.ne.s32.totalorder %s28, %s44
      %p46 = scmp.eq.s32.totalorder %s20, 0
      %p47 = por %p45, %p46
      %s49 = sadd.s32 %s48, 1
      %p52 = scmp.eq.s32.totalorder %s14, 3
      %p53 = scmp.ne.s32.totalorder %s48, %s50
      %p54 = scmp.eq.s32.totalorder %s14, 0
      %p55 = por %p53, %p54
      %p56 = scmp.ne.s32.totalorder %s48, %s50
      %p57 = scmp.eq.s32.totalorder %s19, 3
      %p58 = por %p56, %p57
      %p59 = scmp.ne.s32.totalorder %s50, %s51
      %p60 = scmp.eq.s32.totalorder %s19, 0
      %p61 = por %p59, %p60
      %p62 = scmp.ne.s32.totalorder %s50, %s51
      %p63 = scmp.eq.s32.totalorder %s20, 3
      %p64 = por %p62, %p63
      %p66 = scmp.ne.s32.totalorder %s51, %s65
      %p67 = scmp.eq.s32.totalorder %s20, 0
      %p68 = por %p66, %p67
      %s70 = sadd.s32 %s69, 1
      %p73 = scmp.eq.s32.totalorder %s14, 3
      %p74 = scmp.ne.s32.totalorder %s69, %s71
      %p75 = scmp.eq.s32.totalorder %s14, 0
      %p76 = por %p74, %p75
      %p77 = scmp.ne.s32.totalorder %s69, %s71
      %p78 = scmp.eq.s32.totalorder %s19, 3
      %p79 = por %p77, %p78
      %p80 = scmp.ne.s32.totalorder %s71, %s72
      %p81 = scmp.eq.s32.totalorder %s19, 0
      %p82 = por %p80, %p81
      %p83 = scmp.ne.s32.totalorder %s71, %s72
      %p84 = scmp.eq.s32.totalorder %s20, 3
      %p85 = por %p83, %p84
      %p87 = scmp.ne.s32.totalorder %s72, %s86
      %p88 = scmp.eq.s32.totalorder %s20, 0
      %p89 = por %p87, %p88
      %s91 = sadd.s32 %s90, 1
      %p94 = scmp.eq.s32.totalorder %s14, 3
      %p95 = scmp.ne.s32.totalorder %s90, %s92
      %p96 = scmp.eq.s32.totalorder %s14, 0
      %p97 = por %p95, %p96
      %p98 = scmp.ne.s32.totalorder %s90, %s92
      %p99 = scmp.eq.s32.totalorder %s19, 3
      %p100 = por %p98, %p99
      %p101 = scmp.ne.s32.totalorder %s92, %s93
      %p102 = scmp.eq.s32.totalorder %s19, 0
      %p103 = por %p101, %p102
      %p104 = scmp.ne.s32.totalorder %s92, %s93
      %p105 = scmp.eq.s32.totalorder %s20, 3
      %p106 = por %p104, %p105
      %p108 = scmp.ne.s32.totalorder %s93, %s107
      %p109 = scmp.eq.s32.totalorder %s20, 0
      %p110 = por %p108, %p109
      %s112 = sadd.s32 %s111, 1
      %p115 = scmp.eq.s32.totalorder %s14, 3
      %p116 = scmp.ne.s32.totalorder %s111, %s113
      %p117 = scmp.eq.s32.totalorder %s14, 0
      %p118 = por %p116, %p117
      %p119 = scmp.ne.s32.totalorder %s111, %s113
      %p120 = scmp.eq.s32.totalorder %s19, 3
      %p121 = por %p119, %p120
      %p122 = scmp.ne.s32.totalorder %s113, %s114
      %p123 = scmp.eq.s32.totalorder %s19, 0
      %p124 = por %p122, %p123
      %p125 = scmp.ne.s32.totalorder %s113, %s114
      %p126 = scmp.eq.s32.totalorder %s20, 3
      %p127 = por %p125, %p126
      %p129 = scmp.ne.s32.totalorder %s114, %s128
      %p130 = scmp.eq.s32.totalorder %s20, 0
      %p131 = por %p129, %p130
      %s132 = ssub.s32 %s14, %s21
      %p133 = scmp.eq.s32.totalorder %s132, 0
      %s135 = sadd.s32 %s134, 1
      %s136 = scalar_select %p133, %s134, %s135
      %p139 = pneg %p133
      %p140 = scmp.eq.s32.totalorder %s14, 3
      %p141 = por %p139, %p140
      %p142 = scmp.ne.s32.totalorder %s134, %s137
      %p143 = scmp.eq.s32.totalorder %s14, 0
      %p144 = por %p142, %p143
      %p145 = scmp.ne.s32.totalorder %s134, %s137
      %p146 = scmp.eq.s32.totalorder %s19, 3
      %p147 = por %p145, %p146
      %p148 = scmp.ne.s32.totalorder %s137, %s138
      %p149 = scmp.eq.s32.totalorder %s19, 0
      %p150 = por %p148, %p149
      %p151 = scmp.ne.s32.totalorder %s137, %s138
      %p152 = scmp.eq.s32.totalorder %s20, 3
      %p153 = por %p151, %p152
      %p155 = scmp.ne.s32.totalorder %s138, %s154
      %p156 = scmp.eq.s32.totalorder %s20, 0
      %p157 = por %p155, %p156
      %s159 = sadd.s32 %s158, 1
      %p162 = scmp.eq.s32.totalorder %s14, 3
      %p163 = scmp.ne.s32.totalorder %s158, %s160
      %p164 = scmp.eq.s32.totalorder %s14, 0
      %p165 = por %p163, %p164
      %p166 = scmp.ne.s32.totalorder %s158, %s160
      %p167 = scmp.eq.s32.totalorder %s19, 3
      %p168 = por %p166, %p167
      %p169 = scmp.ne.s32.totalorder %s160, %s161
      %p170 = scmp.eq.s32.totalorder %s19, 0
      %p171 = por %p169, %p170
      %p172 = scmp.ne.s32.totalorder %s160, %s161
      %p173 = scmp.eq.s32.totalorder %s20, 3
      %p174 = por %p172, %p173
      %p176 = scmp.ne.s32.totalorder %s161, %s175
      %p177 = scmp.eq.s32.totalorder %s20, 0
      %p178 = por %p176, %p177
      %p179 = scmp.le.s32.totalorder 1, %s14
      %p180 = scmp.lt.s32.totalorder %s14, 5
      %p181 = pnand %p179, %p180
      %p182 = pneg %p181
      // Predicated region
      $region9: #{tpu_custom_call.1} parent=5 // pred_check
        _
      $region10: #{tpu_custom_call.1} parent=5 // pred_check_branch
        %184 = sbr.rel (%p181) target = $region12
      $region11: #{tpu_custom_call.1} parent=5 // pred_region
        %s185 = ssub.s32 %s14, 1
        // Predicated region
        $region13: #{tpu_custom_call.1} parent=11 // pred_check
          %p186 = pneg %p61
        $region14: #{tpu_custom_call.1} parent=11 // pred_check_branch
          %188 = sbr.rel (%p186) target = $region16
        $region15: #{tpu_custom_call.1} parent=11 // pred_region
          _
        $region16: #{tpu_custom_call.1} parent=11 // pred_fallthru
          _
        // Predicated region
        $region17: #{tpu_custom_call.1} parent=11 // pred_check
          %p189 = pneg %p82
        $region18: #{tpu_custom_call.1} parent=11 // pred_check_branch
          %191 = sbr.rel (%p189) target = $region20
        $region19: #{tpu_custom_call.1} parent=11 // pred_region
          _
        $region20: #{tpu_custom_call.1} parent=11 // pred_fallthru
          _
        // Predicated region
        $region21: #{tpu_custom_call.1} parent=11 // pred_check
          %p192 = pneg %p103
        $region22: #{tpu_custom_call.1} parent=11 // pred_check_branch
          %194 = sbr.rel (%p192) target = $region24
        $region23: #{tpu_custom_call.1} parent=11 // pred_region
          _
        $region24: #{tpu_custom_call.1} parent=11 // pred_fallthru
          _
        // Predicated region
        $region25: #{tpu_custom_call.1} parent=11 // pred_check
          %p195 = pneg %p124
        $region26: #{tpu_custom_call.1} parent=11 // pred_check_branch
          %197 = sbr.rel (%p195) target = $region28
        $region27: #{tpu_custom_call.1} parent=11 // pred_region
          _
        $region28: #{tpu_custom_call.1} parent=11 // pred_fallthru
          _
      $region12: #{tpu_custom_call.1} parent=5 // pred_fallthru
        _
      %p198 = scmp.lt.s32.totalorder %s14, 4
      // Predicated region
      $region29: #{tpu_custom_call.1} parent=5 // pred_check
        %p199 = pneg %p198
      $region30: #{tpu_custom_call.1} parent=5 // pred_check_branch
        %201 = sbr.rel (%p199) target = $region32
      $region31: #{tpu_custom_call.1} parent=5 // pred_region
        // Predicated region
        $region33: #{tpu_custom_call.1} parent=31 // pred_check
          %p202 = pneg %p34
        $region34: #{tpu_custom_call.1} parent=31 // pred_check_branch
          %204 = sbr.rel (%p202) target = $region36
        $region35: #{tpu_custom_call.1} parent=31 // pred_region
          %s205 = smul.u32 2, %s14
          %p206 = scmp.lt.s32.totalorder %s205, 7
          %s207 = scalar_select %p206, %s205, 7
          %s208 = smul.addr %s207, 8
          %s209 = scalar_lea.vmem %s0, %s208
          %s210 = smul.u32 2, %s14
        $region36: #{tpu_custom_call.1} parent=31 // pred_fallthru
          _
      $region32: #{tpu_custom_call.1} parent=5 // pred_fallthru
        _
      %p211 = scmp.le.s32.totalorder 1, %s14
      %p212 = scmp.lt.s32.totalorder %s14, 5
      %p213 = pnand %p211, %p212
      %p214 = pneg %p213
      // Predicated region
      $region37: #{tpu_custom_call.1} parent=5 // pred_check
        _
      $region38: #{tpu_custom_call.1} parent=5 // pred_check_branch
        %216 = sbr.rel (%p213) target = $region40
      $region39: #{tpu_custom_call.1} parent=5 // pred_region
        %s217 = ssub.s32 %s14, 1
        %s218 = smul.u32 2, %s19
        %p219 = scmp.lt.s32.totalorder %s218, 7
        %s220 = scalar_select %p219, %s218, 7
        %s221 = smul.addr %s220, 8
        %s222 = scalar_lea.vmem %s0, %s221
        %p223 = pneg %p40
        %p224 = pneg %p37
        %p225 = pneg %p61
        %p226 = pneg %p58
        %p227 = pneg %p82
        %p228 = pneg %p79
        %p229 = pneg %p103
        %p230 = pneg %p100
        %p231 = pneg %p124
        %p232 = pneg %p121
        %p233 = pneg %p150
        %p234 = pneg %p147
        %s235 = smul.u32 2, %s19
        %p236 = scmp.lt.s32.totalorder %s235, 7
        %s237 = scalar_select %p236, %s235, 7
        %s238 = smul.addr %s237, 8
        %s239 = scalar_lea.vmem %s5, %s238
        %p240 = pneg %p171
        %p241 = pneg %p168
        %s242 = smul.u32 2, %s19
        %p243 = scmp.lt.s32.totalorder %s242, 7
        %s244 = scalar_select %p243, %s242, 7
        %s245 = smul.addr %s244, 8
        %s246 = scalar_lea.vmem %s0, %s245
        %s247 = smul.u32 2, %s19
        %s248 = smul.u32 2, %s19
        %p249 = scmp.lt.s32.totalorder %s248, 7
        %s250 = scalar_select %p249, %s248, 7
        %s251 = smul.addr %s250, 8
        %s252 = scalar_lea.vmem %s5, %s251
        %s253 = smul.u32 2, %s19
        %p255 = scmp.eq.s32.totalorder %s19, 0
        // Predicated region
        $region41: #{tpu_custom_call.1} parent=39 // pred_check
          %p256 = pneg %p255
        $region42: #{tpu_custom_call.1} parent=39 // pred_check_branch
          %258 = sbr.rel (%p256) target = $region44
        $region43: #{tpu_custom_call.1} parent=39 // pred_region
          %vm259 = vcmask 253952
          %260 = vst.msk [vmem:[#allocation2] sm:$0x1] %vm259, 0.0
          %261 = vst.msk [vmem:[#allocation3] sm:$0x1] %vm259, 0.0
          %262 = vst.msk [vmem:[#allocation4] sm:$0x1] %vm259, 0.0
        $region44: #{tpu_custom_call.1} parent=39 // pred_fallthru
          _
        %v263 = vld [vmem:[%s246] sm:$0xff]
        %v264 = vld [vmem:[%s246 + $0x8] sm:$0xff]
        %v265 = vld [vmem:[%s4] sm:$0x1]
        %v267 = vperm.slane %v265, 0
        %v269 = vsub.f32 %v263, %v267
        %v270 = vsub.f32 %v264, %v267
        %v271 = vpack.c.bf16 %v270, %v269
        %v272 = vld [vmem:[%s1] sm:$0xf]
        %v273 = vld [vmem:[%s1 + $0x4] sm:$0xf]
        %v274 = vld [vmem:[%s1 + $0x8] sm:$0xf]
        %v275 = vld [vmem:[%s1 + $0xc] sm:$0xf]
        %v276 = vld [vmem:[%s2] sm:$0x1]
        %v278 = vperm.slane %v276, 0
        %v284 = vunpack.c.l.b16 %v272
        %v285 = vunpack.c.l.b16 %v273
        %v286 = vunpack.c.l.b16 %v274
        %v287 = vunpack.c.l.b16 %v275
        %v288 = vpack.c.b16 %v285, %v284
        %v289 = vpack.c.b16 %v287, %v286
        %vm292 = vcmask 261120
        %v294 = vsel %vm292, %v271, 0
        %296 = vmatpush.bf16.msra.mxu0 0
        %297 = vmatpush.bf16.msra.mxu0 0
        %298 = vmatpush.bf16.msra.mxu0 0
        %299 = vmatpush.bf16.msra.mxu0 0
        %300 = vmatpush.bf16.msra.mxu0 0
        %301 = vmatpush.bf16.msra.mxu0 0
        %302 = vmatpush.bf16.msra.mxu0 %v289
        %303 = vmatpush.bf16.msra.mxu0 %v288
        %304 = vmatmul.bf16.gmra.mxu0 %v294
        %v305 = vpop.f32.mrf.mxu0
        %v306 = vadd.f32 %v278, %v305
        %v307 = vpop.f32.mrf.mxu0
        %v308 = vadd.f32 %v278, %v307
        %309 = vdwg.mxu0
        %v310 = vmax.f32 %v306, 0.0
        %v311 = vmax.f32 %v308, 0.0
        loop: start=0, step=1, limit=31
        $region45: #{tpu_custom_call.1} parent=39 // loop_pre_header
          _
        $region46: #{tpu_custom_call.1} parent=39 // loop_header
          %s315 = sphi 0, %s319
          %p316 = scmp.ge.s32.totalorder %s315, 31
          %v320 = vphi 0, %v357
          %v321 = vphi 0, %v358
        $region47: #{tpu_custom_call.1} parent=39 // loop_header_branch
          %318 = sbr.rel (%p316) target = $region51
        $region48: #{tpu_custom_call.1} parent=39 // loop_body
          %s322 = ssub.s32 30, %s315
          %s323 = sshll.u32 1, %s322
          %v324 = vstv %s323
          %v325 = vor.u32 %v320, %v324
          %v326 = vor.u32 %v321, %v324
          %vm327 = vcmp.ge.s32.totalorder %v310, %v325
          %vm328 = vcmp.ge.s32.totalorder %v311, %v326
          %v329 = vsel %vm327, 1, 0
          %v330 = vsel %vm328, 1, 0
          %v331 = vand.u32 %v329, 65535
          %v332 = vshrl.u32 %v329, 16
          %v333 = vcvt.s32.f32 %v331
          %v334 = vcvt.s32.f32 %v332
          %335 = vadd.xlane.f32.xlu0 %v333
          %v336 = vpop.xlane.xlu0 %335
          %337 = vadd.xlane.f32.xlu0 %v334
          %v338 = vpop.xlane.xlu0 %337
          %v339 = vcvt.f32.s32 %v336
          %v340 = vcvt.f32.s32 %v338
          %v341 = vshll.u32 %v340, 16
          %v342 = vadd.s32 %v341, %v339
          %v343 = vand.u32 %v330, 65535
          %v344 = vshrl.u32 %v330, 16
          %v345 = vcvt.s32.f32 %v343
          %v346 = vcvt.s32.f32 %v344
          %347 = vadd.xlane.f32.xlu0 %v345
          %v348 = vpop.xlane.xlu0 %347
          %349 = vadd.xlane.f32.xlu0 %v346
          %v350 = vpop.xlane.xlu0 %349
          %v351 = vcvt.f32.s32 %v348
          %v352 = vcvt.f32.s32 %v350
          %v353 = vshll.u32 %v352, 16
          %v354 = vadd.s32 %v353, %v351
          %vm355 = vcmp.ge.s32.totalorder %v342, 8
          %vm356 = vcmp.ge.s32.totalorder %v354, 8
          %v357 = vsel %vm355, %v325, %v320
          %v358 = vsel %vm356, %v326, %v321
        $region49: #{tpu_custom_call.1} parent=39 // loop_footer
          %s319 = sadd.s32 1, %s315
        $region50: #{tpu_custom_call.1} parent=39 // loop_footer_branch
          %314 = sbr.rel target = $region46
        $region51: #{tpu_custom_call.1} parent=39 // loop_exit
          _
        %vm361 = vcmp.ge.f32.partialorder %v310, %v320
        %vm362 = vcmp.ge.f32.partialorder %v311, %v321
        %v363 = vsel %vm361, %v310, 0.0
        %v364 = vsel %vm362, %v311, 0.0
        %v365 = vpack.c.bf16 %v364, %v363
        %v366 = vld [vmem:[%s3] sm:$0xf]
        %v367 = vld [vmem:[%s3 + $0x4] sm:$0xf]
        %v368 = vld [vmem:[%s3 + $0x8] sm:$0xf]
        %v369 = vld [vmem:[%s3 + $0xc] sm:$0xf]
        %v370 = vld [vmem:[%s3 + $0x10] sm:$0xf]
        %v371 = vld [vmem:[%s3 + $0x14] sm:$0xf]
        %v372 = vld [vmem:[%s3 + $0x18] sm:$0xf]
        %v373 = vld [vmem:[%s3 + $0x1c] sm:$0xf]
        %v374 = vld [vmem:[%s3 + $0x20] sm:$0xf]
        %v375 = vld [vmem:[%s3 + $0x24] sm:$0xf]
        %v376 = vld [vmem:[%s3 + $0x28] sm:$0xf]
        %v377 = vld [vmem:[%s3 + $0x2c] sm:$0xf]
        %v378 = vld [vmem:[%s3 + $0x30] sm:$0xf]
        %v379 = vld [vmem:[%s3 + $0x34] sm:$0xf]
        %v380 = vld [vmem:[%s3 + $0x38] sm:$0xf]
        %v381 = vld [vmem:[%s3 + $0x3c] sm:$0xf]
        %v398 = vunpack.c.l.b16 %v366
        %v399 = vunpack.c.l.b16 %v367
        %v400 = vunpack.c.l.b16 %v368
        %v401 = vunpack.c.l.b16 %v369
        %v402 = vunpack.c.l.b16 %v370
        %v403 = vunpack.c.l.b16 %v371
        %v404 = vunpack.c.l.b16 %v372
        %v405 = vunpack.c.l.b16 %v373
        %v406 = vunpack.c.l.b16 %v374
        %v407 = vunpack.c.l.b16 %v375
        %v408 = vunpack.c.l.b16 %v376
        %v409 = vunpack.c.l.b16 %v377
        %v410 = vunpack.c.l.b16 %v378
        %v411 = vunpack.c.l.b16 %v379
        %v412 = vunpack.c.l.b16 %v380
        %v413 = vunpack.c.l.b16 %v381
        %v414 = vpack.c.b16 %v399, %v398
        %v415 = vpack.c.b16 %v401, %v400
        %v416 = vpack.c.b16 %v403, %v402
        %v417 = vpack.c.b16 %v405, %v404
        %v418 = vpack.c.b16 %v407, %v406
        %v419 = vpack.c.b16 %v409, %v408
        %v420 = vpack.c.b16 %v411, %v410
        %v421 = vpack.c.b16 %v413, %v412
        %430 = vmatpush.bf16.msra.mxu0 %v421
        %431 = vmatpush.bf16.msra.mxu0 %v420
        %432 = vmatpush.bf16.msra.mxu0 %v419
        %433 = vmatpush.bf16.msra.mxu0 %v418
        %434 = vmatpush.bf16.msra.mxu0 %v417
        %435 = vmatpush.bf16.msra.mxu0 %v416
        %436 = vmatpush.bf16.msra.mxu0 %v415
        %437 = vmatpush.bf16.msra.mxu0 %v414
        %438 = vmatmul.bf16.gmra.mxu0 %v365
        %v439 = vpop.f32.mrf.mxu0
        %v440 = vadd.f32 %v267, %v439
        %v441 = vpop.f32.mrf.mxu0
        %v442 = vadd.f32 %v267, %v441
        %443 = vdwg.mxu0
        %444 = vst.msk [vmem:[%s252] sm:$0xff] %vm292, %v440
        %445 = vst.msk [vmem:[%s252 + $0x8] sm:$0xff] %vm292, %v442
        %v446 = vsub.f32 %v440, %v263
        %v447 = vsub.f32 %v442, %v264
        %p448 = scmp.lt.s32.totalorder %s19, 3
        // Predicated region
        $region52: #{tpu_custom_call.1} parent=39 // pred_check
          %p449 = pneg %p448
        $region53: #{tpu_custom_call.1} parent=39 // pred_check_branch
          %451 = sbr.rel (%p449) target = $region55
        $region54: #{tpu_custom_call.1} parent=39 // pred_region
          %v452 = vld [vmem:[#allocation2] sm:$0x1]
          %v453 = vsel %vm292, %v263, 0.0
          %v454 = vsel %vm292, %v264, 0.0
          %v455 = vadd.f32 %v453, %v454
          %v456 = vrot.slane %v455, 4
          %v457 = vadd.f32 %v455, %v456
          %v458 = vrot.slane %v457, 2
          %v459 = vadd.f32 %v457, %v458
          %v460 = vrot.slane %v459, 1
          %v461 = vadd.f32 %v459, %v460
          %v462 = vadd.f32 %v452, %v461
          %vm463 = vcmask 253952
          %464 = vst.msk [vmem:[#allocation2] sm:$0x1] %vm463, %v462
          %v465 = vld [vmem:[#allocation3] sm:$0x1]
          %v466 = vmul.f32 %v446, %v446
          %v467 = vmul.f32 %v447, %v447
          %v468 = vsel %vm292, %v466, 0.0
          %v469 = vsel %vm292, %v467, 0.0
          %v470 = vadd.f32 %v468, %v469
          %v471 = vrot.slane %v470, 4
          %v472 = vadd.f32 %v470, %v471
          %v473 = vrot.slane %v472, 2
          %v474 = vadd.f32 %v472, %v473
          %v475 = vrot.slane %v474, 1
          %v476 = vadd.f32 %v474, %v475
          %v477 = vadd.f32 %v465, %v476
          %478 = vst.msk [vmem:[#allocation3] sm:$0x1] %vm463, %v477
          %v479 = vld [vmem:[#allocation4] sm:$0x1]
          %v480 = vmul.f32 %v263, %v263
          %v481 = vmul.f32 %v264, %v264
          %v482 = vsel %vm292, %v480, 0.0
          %v483 = vsel %vm292, %v481, 0.0
          %v484 = vadd.f32 %v482, %v483
          %v485 = vrot.slane %v484, 4
          %v486 = vadd.f32 %v484, %v485
          %v487 = vrot.slane %v486, 2
          %v488 = vadd.f32 %v486, %v487
          %v489 = vrot.slane %v488, 1
          %v490 = vadd.f32 %v488, %v489
          %v491 = vadd.f32 %v479, %v490
          %492 = vst.msk [vmem:[#allocation4] sm:$0x1] %vm463, %v491
        $region55: #{tpu_custom_call.1} parent=39 // pred_fallthru
          _
        %p493 = scmp.eq.s32.totalorder %s19, 3
        // Predicated region
        $region56: #{tpu_custom_call.1} parent=39 // pred_check
          %p494 = pneg %p493
        $region57: #{tpu_custom_call.1} parent=39 // pred_check_branch
          %496 = sbr.rel (%p494) target = $region59
        $region58: #{tpu_custom_call.1} parent=39 // pred_region
          %s497 = smul.u32 %s19, 16
          %v498 = vlaneseq
          %v499 = vshrl.u32 %v498, 7
          %v500 = vadd.s32 %v499, 8
          %v501 = vstv %s497
          %v502 = vadd.s32 %v501, %v499
          %v503 = vadd.s32 %v501, %v500
          %vm504 = vcmp.lt.s32.totalorder %v502, 50
          %vm505 = vcmp.lt.s32.totalorder %v503, 50
          %v506 = vsel %vm504, 1, 0
          %v507 = vsel %vm505, 1, 0
          %vm508 = vcmp.eq.s32.totalorder %v506, 1
          %vm509 = vcmp.eq.s32.totalorder %v507, 1
          %v510 = vsel %vm508, %v263, 0.0
          %v511 = vsel %vm509, %v264, 0.0
          %v512 = vsel %vm508, %v446, 0.0
          %v513 = vsel %vm509, %v447, 0.0
          %v514 = vld [vmem:[#allocation2] sm:$0x1]
          %v515 = vsel %vm292, %v510, 0.0
          %v516 = vsel %vm292, %v511, 0.0
          %v517 = vadd.f32 %v515, %v516
          %v518 = vrot.slane %v517, 4
          %v519 = vadd.f32 %v517, %v518
          %v520 = vrot.slane %v519, 2
          %v521 = vadd.f32 %v519, %v520
          %v522 = vrot.slane %v521, 1
          %v523 = vadd.f32 %v521, %v522
          %v524 = vadd.f32 %v514, %v523
          %vm525 = vcmask 253952
          %526 = vst.msk [vmem:[#allocation2] sm:$0x1] %vm525, %v524
          %v527 = vld [vmem:[#allocation3] sm:$0x1]
          %v528 = vmul.f32 %v512, %v512
          %v529 = vmul.f32 %v513, %v513
          %v530 = vsel %vm292, %v528, 0.0
          %v531 = vsel %vm292, %v529, 0.0
          %v532 = vadd.f32 %v530, %v531
          %v533 = vrot.slane %v532, 4
          %v534 = vadd.f32 %v532, %v533
          %v535 = vrot.slane %v534, 2
          %v536 = vadd.f32 %v534, %v535
          %v537 = vrot.slane %v536, 1
          %v538 = vadd.f32 %v536, %v537
          %v539 = vadd.f32 %v527, %v538
          %540 = vst.msk [vmem:[#allocation3] sm:$0x1] %vm525, %v539
          %v541 = vld [vmem:[#allocation4] sm:$0x1]
          %v542 = vmul.f32 %v510, %v510
          %v543 = vmul.f32 %v511, %v511
          %v544 = vsel %vm292, %v542, 0.0
          %v545 = vsel %vm292, %v543, 0.0
          %v546 = vadd.f32 %v544, %v545
          %v547 = vrot.slane %v546, 4
          %v548 = vadd.f32 %v546, %v547
          %v549 = vrot.slane %v548, 2
          %v550 = vadd.f32 %v548, %v549
          %v551 = vrot.slane %v550, 1
          %v552 = vadd.f32 %v550, %v551
          %v553 = vadd.f32 %v541, %v552
          %554 = vst.msk [vmem:[#allocation4] sm:$0x1] %vm525, %v553
          %v555 = vld [vmem:[#allocation2] sm:$0x1]
          %v556 = vld [vmem:[#allocation4] sm:$0x1]
          %v557 = vmul.f32 %v555, %v555
          %v558 = vmul.f32 %v557, 0.02
          %v559 = vsub.f32 %v556, %v558
          %v560 = vld [vmem:[#allocation3] sm:$0x1]
          %v561 = vsel %vm525, %v560, 0.0
          %562 = vadd.xlane.f32.xlu0 %v561
          %v563 = vpop.xlane.xlu0 %562
          %v564 = vsel %vm525, %v559, 0.0
          %565 = vadd.xlane.f32.xlu0 %v564
          %v566 = vpop.xlane.xlu0 %565
          %v567 = vrcp.pop %v566
          %v568 = vmul.f32 %v566, %v567
          %v569 = vsub.f32 1.0, %v568
          %v570 = vmul.f32 %v567, %v569
          %v571 = vadd.f32 %v567, %v570
          %vm572 = vweird.f32 %v566
          %vm573 = vweird.f32 %v567
          %vm574 = vmor %vm572, %vm573
          %v575 = vsel %vm574, %v567, %v571
          %v576 = vand.u32 2147483647, %v566
          %vm577 = vcmp.eq.f32.partialorder %v576, 8.507059e+37
          %v578 = vand.u32 %v566, 2147483648
          %v579 = vor.u32 1.1754944e-38, %v578
          %v580 = vsel %vm577, %v579, %v575
          %v581 = vmul.f32 %v563, %v580
          %vm582 = vcmask 0
          %583 = vst.msk [vmem:[#allocation5] sm:$0x1] %vm582, %v581
        $region59: #{tpu_custom_call.1} parent=39 // pred_fallthru
          _
        %s584 = smul.u32 2, %s19
        %p585 = scmp.lt.s32.totalorder %s584, 7
        %s586 = scalar_select %p585, %s584, 7
        %s587 = smul.addr %s586, 8
        %s588 = scalar_lea.vmem %s5, %s587
        // Predicated region
        $region60: #{tpu_custom_call.1} parent=39 // pred_check
          %p589 = pneg %p147
        $region61: #{tpu_custom_call.1} parent=39 // pred_check_branch
          %591 = sbr.rel (%p589) target = $region63
        $region62: #{tpu_custom_call.1} parent=39 // pred_region
          %s592 = smul.u32 2, %s19
        $region63: #{tpu_custom_call.1} parent=39 // pred_fallthru
          _
        // Predicated region
        $region64: #{tpu_custom_call.1} parent=39 // pred_check
          %p593 = pneg %p168
        $region65: #{tpu_custom_call.1} parent=39 // pred_check_branch
          %595 = sbr.rel (%p593) target = $region67
        $region66: #{tpu_custom_call.1} parent=39 // pred_region
          %597 = vsyncadd [#allocation6], 0
          %s599 = sshll.u32 [#allocation5], 4
          %s600 = int_to_ptr.vmem [resolvable:$true] %s599
          %s601 = sshll.u32 %s6, 4
          %s602 = int_to_ptr.hbm [resolvable:$true] %s601
          %604 = dma.vmem_to_hbm [thread:$0]  %s600, 16, %s602, [#allocation6]
        $region67: #{tpu_custom_call.1} parent=39 // pred_fallthru
          _
        // Predicated region
        $region68: #{tpu_custom_call.1} parent=39 // pred_check
          %p605 = pneg %p168
        $region69: #{tpu_custom_call.1} parent=39 // pred_check_branch
          %607 = sbr.rel (%p605) target = $region71
        $region70: #{tpu_custom_call.1} parent=39 // pred_region
          %609 = dma.done [#allocation6], 16
        $region71: #{tpu_custom_call.1} parent=39 // pred_fallthru
          _
      $region40: #{tpu_custom_call.1} parent=5 // pred_fallthru
        _
      %p610 = scmp.le.s32.totalorder 2, %s14
      // Predicated region
      $region72: #{tpu_custom_call.1} parent=5 // pred_check
        %p611 = pneg %p610
      $region73: #{tpu_custom_call.1} parent=5 // pred_check_branch
        %613 = sbr.rel (%p611) target = $region75
      $region74: #{tpu_custom_call.1} parent=5 // pred_region
        %s614 = ssub.s32 %s14, 2
        // Predicated region
        $region76: #{tpu_custom_call.1} parent=74 // pred_check
          %p615 = pneg %p153
        $region77: #{tpu_custom_call.1} parent=74 // pred_check_branch
          %617 = sbr.rel (%p615) target = $region79
        $region78: #{tpu_custom_call.1} parent=74 // pred_region
          %s618 = smul.u32 2, %s20
          %p619 = scmp.lt.s32.totalorder %s618, 7
          %s620 = scalar_select %p619, %s618, 7
          %s621 = smul.addr %s620, 8
          %s622 = scalar_lea.vmem %s5, %s621
        $region79: #{tpu_custom_call.1} parent=74 // pred_fallthru
          _
      $region75: #{tpu_custom_call.1} parent=5 // pred_fallthru
        _
    $region6: #{tpu_custom_call.1} parent=1 // loop_footer
      %s18 = sadd.s32 1, %s14
    $region7: #{tpu_custom_call.1} parent=1 // loop_footer_branch
      %13 = sbr.rel target = $region3
    $region8: #{tpu_custom_call.1} parent=1 // loop_exit
      _
    %623 = vsyncpa [#allocation6], 1
    %s624 = scalar_lea.sflag [#allocation6], 1
    %625 = vsyncpa %s624, 1

// kernel: tpu_custom_call.1
$region0: #{tpu_custom_call.1}
  #allocation0 [shape = 'u32[]', space=smem, size = 0x4, offset = 0x4, fixed_abs, tag = 'smem constant byte address 0x4 - core index']
  #allocation1 [shape = 'u32[72,128]{1,0:T(1,128)}', space=vmem, size = 0x9000, scoped, tag = 'internal scratch']
  #allocation2 [shape = 'f32[1,32]{1,0:T(1,128)}', space=vmem, size = 0x200, scoped, tag = 'scratch operand']
  #allocation3 [shape = 'f32[1,32]{1,0:T(1,128)}', space=vmem, size = 0x200, scoped, tag = 'scratch operand']
  #allocation4 [shape = 'f32[1,32]{1,0:T(1,128)}', space=vmem, size = 0x200, scoped, tag = 'scratch operand']
  %s0 = inlined_call_operand.vmem [shape: f32[64,32], index: 0, kind: input, shape index: {}]
  %s1 = inlined_call_operand.vmem [shape: bf16[32,128], index: 1, kind: input, shape index: {}]
  %s2 = inlined_call_operand.vmem [shape: f32[1,128], index: 2, kind: input, shape index: {}]
  %s3 = inlined_call_operand.vmem [shape: bf16[128,32], index: 3, kind: input, shape index: {}]
  %s4 = inlined_call_operand.vmem [shape: f32[1,32], index: 4, kind: input, shape index: {}]
  %s5 = inlined_call_operand.vmem [shape: f32[64,32], index: 5, kind: output, shape index: {0}]
  %s6 = inlined_call_operand.hbm [shape: f32[1,1], index: 6, kind: output, shape index: {1}]
  %7 = xla_tuple %s5, %s6
  %s8 = sld [smem:[#allocation0]]
  $region80: #{tpu_custom_call.1} parent=0
    _
  %s10 = ssub.s32 1, %s8
  %s11 = scalar_select 0, %s10, %s8
  $region1: #{tpu_custom_call.1} parent=0
    #allocation5 [shape = 'u8[512]{0}', space=vmem, size = 0x400, scoped, tag = 'output window, operand 1, single buffered']
    #allocation6 [shape = 's32[2]{0}', space=sflag, size = 0x8, scoped, tag = 'scoped memory for tpu_custom_call.1']
    %12 = vsyncpa [#allocation6], 0
    loop: start=0, step=1, limit=6
    $region2: #{tpu_custom_call.1} parent=1 // loop_pre_header
      _
    $region3: #{tpu_custom_call.1} parent=1 // loop_header
      %s14 = sphi 0, %s18
      %p15 = scmp.ge.s32.totalorder %s14, 6
      %s24 = sphi 0, %s26
      %s27 = sphi 0, %s24
      %s28 = sphi 0, %s27
      %s44 = sphi 0, %s28
      %s48 = sphi 0, %s48
      %s50 = sphi 0, %s48
      %s51 = sphi 0, %s50
      %s65 = sphi 0, %s51
      %s69 = sphi 0, %s69
      %s71 = sphi 0, %s69
      %s72 = sphi 0, %s71
      %s86 = sphi 0, %s72
      %s90 = sphi 0, %s90
      %s92 = sphi 0, %s90
      %s93 = sphi 0, %s92
      %s107 = sphi 0, %s93
      %s111 = sphi 0, %s111
      %s113 = sphi 0, %s111
      %s114 = sphi 0, %s113
      %s128 = sphi 0, %s114
      %s134 = sphi 0, %s136
      %s137 = sphi 0, %s134
      %s138 = sphi 0, %s137
      %s154 = sphi 0, %s138
      %s158 = sphi 0, %s158
      %s160 = sphi 0, %s158
      %s161 = sphi 0, %s160
      %s175 = sphi 0, %s161
    $region4: #{tpu_custom_call.1} parent=1 // loop_header_branch
      %17 = sbr.rel (%p15) target = $region8
    $region5: #{tpu_custom_call.1} parent=1 // loop_body
      %s19 = ssub.s32 %s14, 1
      %s20 = ssub.s32 %s14, 2
      %s21 = sadd.s32 %s14, 1
      %s22 = ssub.s32 %s14, %s21
      %p23 = scmp.eq.s32.totalorder %s22, 0
      %s25 = sadd.s32 %s24, 1
      %s26 = scalar_select %p23, %s24, %s25
      %p29 = pneg %p23
      %p30 = scmp.eq.s32.totalorder %s14, 3
      %p31 = por %p29, %p30
      %p32 = scmp.ne.s32.totalorder %s24, %s27
      %p33 = scmp.eq.s32.totalorder %s14, 0
      %p34 = por %p32, %p33
      %p35 = scmp.ne.s32.totalorder %s24, %s27
      %p36 = scmp.eq.s32.totalorder %s19, 3
      %p37 = por %p35, %p36
      %p38 = scmp.ne.s32.totalorder %s27, %s28
      %p39 = scmp.eq.s32.totalorder %s19, 0
      %p40 = por %p38, %p39
      %p41 = scmp.ne.s32.totalorder %s27, %s28
      %p42 = scmp.eq.s32.totalorder %s20, 3
      %p43 = por %p41, %p42
      %p45 = scmp.ne.s32.totalorder %s28, %s44
      %p46 = scmp.eq.s32.totalorder %s20, 0
      %p47 = por %p45, %p46
      %s49 = sadd.s32 %s48, 1
      %p52 = scmp.eq.s32.totalorder %s14, 3
      %p53 = scmp.ne.s32.totalorder %s48, %s50
      %p54 = scmp.eq.s32.totalorder %s14, 0
      %p55 = por %p53, %p54
      %p56 = scmp.ne.s32.totalorder %s48, %s50
      %p57 = scmp.eq.s32.totalorder %s19, 3
      %p58 = por %p56, %p57
      %p59 = scmp.ne.s32.totalorder %s50, %s51
      %p60 = scmp.eq.s32.totalorder %s19, 0
      %p61 = por %p59, %p60
      %p62 = scmp.ne.s32.totalorder %s50, %s51
      %p63 = scmp.eq.s32.totalorder %s20, 3
      %p64 = por %p62, %p63
      %p66 = scmp.ne.s32.totalorder %s51, %s65
      %p67 = scmp.eq.s32.totalorder %s20, 0
      %p68 = por %p66, %p67
      %s70 = sadd.s32 %s69, 1
      %p73 = scmp.eq.s32.totalorder %s14, 3
      %p74 = scmp.ne.s32.totalorder %s69, %s71
      %p75 = scmp.eq.s32.totalorder %s14, 0
      %p76 = por %p74, %p75
      %p77 = scmp.ne.s32.totalorder %s69, %s71
      %p78 = scmp.eq.s32.totalorder %s19, 3
      %p79 = por %p77, %p78
      %p80 = scmp.ne.s32.totalorder %s71, %s72
      %p81 = scmp.eq.s32.totalorder %s19, 0
      %p82 = por %p80, %p81
      %p83 = scmp.ne.s32.totalorder %s71, %s72
      %p84 = scmp.eq.s32.totalorder %s20, 3
      %p85 = por %p83, %p84
      %p87 = scmp.ne.s32.totalorder %s72, %s86
      %p88 = scmp.eq.s32.totalorder %s20, 0
      %p89 = por %p87, %p88
      %s91 = sadd.s32 %s90, 1
      %p94 = scmp.eq.s32.totalorder %s14, 3
      %p95 = scmp.ne.s32.totalorder %s90, %s92
      %p96 = scmp.eq.s32.totalorder %s14, 0
      %p97 = por %p95, %p96
      %p98 = scmp.ne.s32.totalorder %s90, %s92
      %p99 = scmp.eq.s32.totalorder %s19, 3
      %p100 = por %p98, %p99
      %p101 = scmp.ne.s32.totalorder %s92, %s93
      %p102 = scmp.eq.s32.totalorder %s19, 0
      %p103 = por %p101, %p102
      %p104 = scmp.ne.s32.totalorder %s92, %s93
      %p105 = scmp.eq.s32.totalorder %s20, 3
      %p106 = por %p104, %p105
      %p108 = scmp.ne.s32.totalorder %s93, %s107
      %p109 = scmp.eq.s32.totalorder %s20, 0
      %p110 = por %p108, %p109
      %s112 = sadd.s32 %s111, 1
      %p115 = scmp.eq.s32.totalorder %s14, 3
      %p116 = scmp.ne.s32.totalorder %s111, %s113
      %p117 = scmp.eq.s32.totalorder %s14, 0
      %p118 = por %p116, %p117
      %p119 = scmp.ne.s32.totalorder %s111, %s113
      %p120 = scmp.eq.s32.totalorder %s19, 3
      %p121 = por %p119, %p120
      %p122 = scmp.ne.s32.totalorder %s113, %s114
      %p123 = scmp.eq.s32.totalorder %s19, 0
      %p124 = por %p122, %p123
      %p125 = scmp.ne.s32.totalorder %s113, %s114
      %p126 = scmp.eq.s32.totalorder %s20, 3
      %p127 = por %p125, %p126
      %p129 = scmp.ne.s32.totalorder %s114, %s128
      %p130 = scmp.eq.s32.totalorder %s20, 0
      %p131 = por %p129, %p130
      %s132 = ssub.s32 %s14, %s21
      %p133 = scmp.eq.s32.totalorder %s132, 0
      %s135 = sadd.s32 %s134, 1
      %s136 = scalar_select %p133, %s134, %s135
      %p139 = pneg %p133
      %p140 = scmp.eq.s32.totalorder %s14, 3
      %p141 = por %p139, %p140
      %p142 = scmp.ne.s32.totalorder %s134, %s137
      %p143 = scmp.eq.s32.totalorder %s14, 0
      %p144 = por %p142, %p143
      %p145 = scmp.ne.s32.totalorder %s134, %s137
      %p146 = scmp.eq.s32.totalorder %s19, 3
      %p147 = por %p145, %p146
      %p148 = scmp.ne.s32.totalorder %s137, %s138
      %p149 = scmp.eq.s32.totalorder %s19, 0
      %p150 = por %p148, %p149
      %p151 = scmp.ne.s32.totalorder %s137, %s138
      %p152 = scmp.eq.s32.totalorder %s20, 3
      %p153 = por %p151, %p152
      %p155 = scmp.ne.s32.totalorder %s138, %s154
      %p156 = scmp.eq.s32.totalorder %s20, 0
      %p157 = por %p155, %p156
      %s159 = sadd.s32 %s158, 1
      %p162 = scmp.eq.s32.totalorder %s14, 3
      %p163 = scmp.ne.s32.totalorder %s158, %s160
      %p164 = scmp.eq.s32.totalorder %s14, 0
      %p165 = por %p163, %p164
      %p166 = scmp.ne.s32.totalorder %s158, %s160
      %p167 = scmp.eq.s32.totalorder %s19, 3
      %p168 = por %p166, %p167
      %p169 = scmp.ne.s32.totalorder %s160, %s161
      %p170 = scmp.eq.s32.totalorder %s19, 0
      %p171 = por %p169, %p170
      %p172 = scmp.ne.s32.totalorder %s160, %s161
      %p173 = scmp.eq.s32.totalorder %s20, 3
      %p174 = por %p172, %p173
      %p176 = scmp.ne.s32.totalorder %s161, %s175
      %p177 = scmp.eq.s32.totalorder %s20, 0
      %p178 = por %p176, %p177
      %p179 = scmp.le.s32.totalorder 1, %s14
      %p180 = scmp.lt.s32.totalorder %s14, 5
      %p181 = pnand %p179, %p180
      %p182 = pneg %p181
      // Predicated region
      $region9: #{tpu_custom_call.1} parent=5 // pred_check
        _
      $region10: #{tpu_custom_call.1} parent=5 // pred_check_branch
        %184 = sbr.rel (%p181) target = $region12
      $region11: #{tpu_custom_call.1} parent=5 // pred_region
        %s185 = ssub.s32 %s14, 1
        // Predicated region
        $region13: #{tpu_custom_call.1} parent=11 // pred_check
          %p186 = pneg %p61
        $region14: #{tpu_custom_call.1} parent=11 // pred_check_branch
          %188 = sbr.rel (%p186) target = $region16
        $region15: #{tpu_custom_call.1} parent=11 // pred_region
          _
        $region16: #{tpu_custom_call.1} parent=11 // pred_fallthru
          _
        // Predicated region
        $region17: #{tpu_custom_call.1} parent=11 // pred_check
          %p189 = pneg %p82
        $region18: #{tpu_custom_call.1} parent=11 // pred_check_branch
          %191 = sbr.rel (%p189) target = $region20
        $region19: #{tpu_custom_call.1} parent=11 // pred_region
          _
        $region20: #{tpu_custom_call.1} parent=11 // pred_fallthru
          _
        // Predicated region
        $region21: #{tpu_custom_call.1} parent=11 // pred_check
          %p192 = pneg %p103
        $region22: #{tpu_custom_call.1} parent=11 // pred_check_branch
          %194 = sbr.rel (%p192) target = $region24
        $region23: #{tpu_custom_call.1} parent=11 // pred_region
          _
        $region24: #{tpu_custom_call.1} parent=11 // pred_fallthru
          _
        // Predicated region
        $region25: #{tpu_custom_call.1} parent=11 // pred_check
          %p195 = pneg %p124
        $region26: #{tpu_custom_call.1} parent=11 // pred_check_branch
          %197 = sbr.rel (%p195) target = $region28
        $region27: #{tpu_custom_call.1} parent=11 // pred_region
          _
        $region28: #{tpu_custom_call.1} parent=11 // pred_fallthru
          _
      $region12: #{tpu_custom_call.1} parent=5 // pred_fallthru
        _
      %p198 = scmp.lt.s32.totalorder %s14, 4
      // Predicated region
      $region29: #{tpu_custom_call.1} parent=5 // pred_check
        %p199 = pneg %p198
      $region30: #{tpu_custom_call.1} parent=5 // pred_check_branch
        %201 = sbr.rel (%p199) target = $region32
      $region31: #{tpu_custom_call.1} parent=5 // pred_region
        // Predicated region
        $region33: #{tpu_custom_call.1} parent=31 // pred_check
          %p202 = pneg %p34
        $region34: #{tpu_custom_call.1} parent=31 // pred_check_branch
          %204 = sbr.rel (%p202) target = $region36
        $region35: #{tpu_custom_call.1} parent=31 // pred_region
          %s205 = smul.u32 2, %s14
          %p206 = scmp.lt.s32.totalorder %s205, 7
          %s207 = scalar_select %p206, %s205, 7
          %s208 = smul.addr %s207, 8
          %s209 = scalar_lea.vmem %s0, %s208
          %s210 = smul.u32 2, %s14
        $region36: #{tpu_custom_call.1} parent=31 // pred_fallthru
          _
      $region32: #{tpu_custom_call.1} parent=5 // pred_fallthru
        _
      %p211 = scmp.le.s32.totalorder 1, %s14
      %p212 = scmp.lt.s32.totalorder %s14, 5
      %p213 = pnand %p211, %p212
      %p214 = pneg %p213
      // Predicated region
      $region37: #{tpu_custom_call.1} parent=5 // pred_check
        _
      $region38: #{tpu_custom_call.1} parent=5 // pred_check_branch
        %216 = sbr.rel (%p213) target = $region40
      $region39: #{tpu_custom_call.1} parent=5 // pred_region
        %s217 = ssub.s32 %s14, 1
        %s218 = smul.u32 2, %s19
        %p219 = scmp.lt.s32.totalorder %s218, 7
        %s220 = scalar_select %p219, %s218, 7
        %s221 = smul.addr %s220, 8
        %s222 = scalar_lea.vmem %s0, %s221
        %p223 = pneg %p40
        %p224 = pneg %p37
        %p225 = pneg %p61
        %p226 = pneg %p58
        %p227 = pneg %p82
        %p228 = pneg %p79
        %p229 = pneg %p103
        %p230 = pneg %p100
        %p231 = pneg %p124
        %p232 = pneg %p121
        %p233 = pneg %p150
        %p234 = pneg %p147
        %s235 = smul.u32 2, %s19
        %p236 = scmp.lt.s32.totalorder %s235, 7
        %s237 = scalar_select %p236, %s235, 7
        %s238 = smul.addr %s237, 8
        %s239 = scalar_lea.vmem %s5, %s238
        %p240 = pneg %p171
        %p241 = pneg %p168
        %s242 = smul.u32 2, %s19
        %p243 = scmp.lt.s32.totalorder %s242, 7
        %s244 = scalar_select %p243, %s242, 7
        %s245 = smul.addr %s244, 8
        %s246 = scalar_lea.vmem %s0, %s245
        %s247 = smul.u32 2, %s19
        %s248 = smul.u32 2, %s19
        %p249 = scmp.lt.s32.totalorder %s248, 7
        %s250 = scalar_select %p249, %s248, 7
        %s251 = smul.addr %s250, 8
        %s252 = scalar_lea.vmem %s5, %s251
        %s253 = smul.u32 2, %s19
        %p255 = scmp.eq.s32.totalorder %s19, 0
        // Predicated region
        $region41: #{tpu_custom_call.1} parent=39 // pred_check
          %p256 = pneg %p255
        $region42: #{tpu_custom_call.1} parent=39 // pred_check_branch
          %258 = sbr.rel (%p256) target = $region44
        $region43: #{tpu_custom_call.1} parent=39 // pred_region
          %vm259 = vcmask 253952
          %260 = vst.msk [vmem:[#allocation2] sm:$0x1] %vm259, 0.0
          %261 = vst.msk [vmem:[#allocation3] sm:$0x1] %vm259, 0.0
          %262 = vst.msk [vmem:[#allocation4] sm:$0x1] %vm259, 0.0
        $region44: #{tpu_custom_call.1} parent=39 // pred_fallthru
          _
        %v263 = vld [vmem:[%s246] sm:$0xff]
        %v264 = vld [vmem:[%s246 + $0x8] sm:$0xff]
        %v265 = vld [vmem:[%s4] sm:$0x1]
        %v267 = vperm.slane %v265, 0
        %v269 = vsub.f32 %v263, %v267
        %v270 = vsub.f32 %v264, %v267
        %v271 = vpack.c.bf16 %v270, %v269
        %v272 = vld [vmem:[%s1] sm:$0xf]
        %v273 = vld [vmem:[%s1 + $0x4] sm:$0xf]
        %v274 = vld [vmem:[%s1 + $0x8] sm:$0xf]
        %v275 = vld [vmem:[%s1 + $0xc] sm:$0xf]
        %v276 = vld [vmem:[%s2] sm:$0x1]
        %v278 = vperm.slane %v276, 0
        %v284 = vunpack.c.l.b16 %v272
        %v285 = vunpack.c.l.b16 %v273
        %v286 = vunpack.c.l.b16 %v274
        %v287 = vunpack.c.l.b16 %v275
        %v288 = vpack.c.b16 %v285, %v284
        %v289 = vpack.c.b16 %v287, %v286
        %vm292 = vcmask 261120
        %v294 = vsel %vm292, %v271, 0
        %296 = vmatpush.bf16.msra.mxu0 0
        %297 = vmatpush.bf16.msra.mxu0 0
        %298 = vmatpush.bf16.msra.mxu0 0
        %299 = vmatpush.bf16.msra.mxu0 0
        %300 = vmatpush.bf16.msra.mxu0 0
        %301 = vmatpush.bf16.msra.mxu0 0
        %302 = vmatpush.bf16.msra.mxu0 %v289
        %303 = vmatpush.bf16.msra.mxu0 %v288
        %304 = vmatmul.bf16.gmra.mxu0 %v294
        %v305 = vpop.f32.mrf.mxu0
        %v306 = vadd.f32 %v278, %v305
        %v307 = vpop.f32.mrf.mxu0
        %v308 = vadd.f32 %v278, %v307
        %309 = vdwg.mxu0
        %v310 = vmax.f32 %v306, 0.0
        %v311 = vmax.f32 %v308, 0.0
        loop: start=0, step=1, limit=31
        $region45: #{tpu_custom_call.1} parent=39 // loop_pre_header
          _
        $region46: #{tpu_custom_call.1} parent=39 // loop_header
          %s315 = sphi 0, %s319
          %p316 = scmp.ge.s32.totalorder %s315, 31
          %v320 = vphi 0, %v357
          %v321 = vphi 0, %v358
        $region47: #{tpu_custom_call.1} parent=39 // loop_header_branch
          %318 = sbr.rel (%p316) target = $region51
        $region48: #{tpu_custom_call.1} parent=39 // loop_body
          %s322 = ssub.s32 30, %s315
          %s323 = sshll.u32 1, %s322
          %v324 = vstv %s323
          %v325 = vor.u32 %v320, %v324
          %v326 = vor.u32 %v321, %v324
          %vm327 = vcmp.ge.s32.totalorder %v310, %v325
          %vm328 = vcmp.ge.s32.totalorder %v311, %v326
          %v329 = vsel %vm327, 1, 0
          %v330 = vsel %vm328, 1, 0
          %v331 = vand.u32 %v329, 65535
          %v332 = vshrl.u32 %v329, 16
          %v333 = vcvt.s32.f32 %v331
          %v334 = vcvt.s32.f32 %v332
          %335 = vadd.xlane.f32.xlu0 %v333
          %v336 = vpop.xlane.xlu0 %335
          %337 = vadd.xlane.f32.xlu0 %v334
          %v338 = vpop.xlane.xlu0 %337
          %v339 = vcvt.f32.s32 %v336
          %v340 = vcvt.f32.s32 %v338
          %v341 = vshll.u32 %v340, 16
          %v342 = vadd.s32 %v341, %v339
          %v343 = vand.u32 %v330, 65535
          %v344 = vshrl.u32 %v330, 16
          %v345 = vcvt.s32.f32 %v343
          %v346 = vcvt.s32.f32 %v344
          %347 = vadd.xlane.f32.xlu0 %v345
          %v348 = vpop.xlane.xlu0 %347
          %349 = vadd.xlane.f32.xlu0 %v346
          %v350 = vpop.xlane.xlu0 %349
          %v351 = vcvt.f32.s32 %v348
          %v352 = vcvt.f32.s32 %v350
          %v353 = vshll.u32 %v352, 16
          %v354 = vadd.s32 %v353, %v351
          %vm355 = vcmp.ge.s32.totalorder %v342, 8
          %vm356 = vcmp.ge.s32.totalorder %v354, 8
          %v357 = vsel %vm355, %v325, %v320
          %v358 = vsel %vm356, %v326, %v321
        $region49: #{tpu_custom_call.1} parent=39 // loop_footer
          %s319 = sadd.s32 1, %s315
        $region50: #{tpu_custom_call.1} parent=39 // loop_footer_branch
          %314 = sbr.rel target = $region46
        $region51: #{tpu_custom_call.1} parent=39 // loop_exit
          _
        %vm361 = vcmp.ge.f32.partialorder %v310, %v320
        %vm362 = vcmp.ge.f32.partialorder %v311, %v321
        %v363 = vsel %vm361, %v310, 0.0
        %v364 = vsel %vm362, %v311, 0.0
        %v365 = vpack.c.bf16 %v364, %v363
        %v366 = vld [vmem:[%s3] sm:$0xf]
        %v367 = vld [vmem:[%s3 + $0x4] sm:$0xf]
        %v368 = vld [vmem:[%s3 + $0x8] sm:$0xf]
        %v369 = vld [vmem:[%s3 + $0xc] sm:$0xf]
        %v370 = vld [vmem:[%s3 + $0x10] sm:$0xf]
        %v371 = vld [vmem:[%s3 + $0x14] sm:$0xf]
        %v372 = vld [vmem:[%s3 + $0x18] sm:$0xf]
        %v373 = vld [vmem:[%s3 + $0x1c] sm:$0xf]
        %v374 = vld [vmem:[%s3 + $0x20] sm:$0xf]
        %v375 = vld [vmem:[%s3 + $0x24] sm:$0xf]
        %v376 = vld [vmem:[%s3 + $0x28] sm:$0xf]
        %v377 = vld [vmem:[%s3 + $0x2c] sm:$0xf]
        %v378 = vld [vmem:[%s3 + $0x30] sm:$0xf]
        %v379 = vld [vmem:[%s3 + $0x34] sm:$0xf]
        %v380 = vld [vmem:[%s3 + $0x38] sm:$0xf]
        %v381 = vld [vmem:[%s3 + $0x3c] sm:$0xf]
        %v398 = vunpack.c.l.b16 %v366
        %v399 = vunpack.c.l.b16 %v367
        %v400 = vunpack.c.l.b16 %v368
        %v401 = vunpack.c.l.b16 %v369
        %v402 = vunpack.c.l.b16 %v370
        %v403 = vunpack.c.l.b16 %v371
        %v404 = vunpack.c.l.b16 %v372
        %v405 = vunpack.c.l.b16 %v373
        %v406 = vunpack.c.l.b16 %v374
        %v407 = vunpack.c.l.b16 %v375
        %v408 = vunpack.c.l.b16 %v376
        %v409 = vunpack.c.l.b16 %v377
        %v410 = vunpack.c.l.b16 %v378
        %v411 = vunpack.c.l.b16 %v379
        %v412 = vunpack.c.l.b16 %v380
        %v413 = vunpack.c.l.b16 %v381
        %v414 = vpack.c.b16 %v399, %v398
        %v415 = vpack.c.b16 %v401, %v400
        %v416 = vpack.c.b16 %v403, %v402
        %v417 = vpack.c.b16 %v405, %v404
        %v418 = vpack.c.b16 %v407, %v406
        %v419 = vpack.c.b16 %v409, %v408
        %v420 = vpack.c.b16 %v411, %v410
        %v421 = vpack.c.b16 %v413, %v412
        %430 = vmatpush.bf16.msra.mxu0 %v421
        %431 = vmatpush.bf16.msra.mxu0 %v420
        %432 = vmatpush.bf16.msra.mxu0 %v419
        %433 = vmatpush.bf16.msra.mxu0 %v418
        %434 = vmatpush.bf16.msra.mxu0 %v417
        %435 = vmatpush.bf16.msra.mxu0 %v416
        %436 = vmatpush.bf16.msra.mxu0 %v415
        %437 = vmatpush.bf16.msra.mxu0 %v414
        %438 = vmatmul.bf16.gmra.mxu0 %v365
        %v439 = vpop.f32.mrf.mxu0
        %v440 = vadd.f32 %v267, %v439
        %v441 = vpop.f32.mrf.mxu0
        %v442 = vadd.f32 %v267, %v441
        %443 = vdwg.mxu0
        %444 = vst.msk [vmem:[%s252] sm:$0xff] %vm292, %v440
        %445 = vst.msk [vmem:[%s252 + $0x8] sm:$0xff] %vm292, %v442
        %v446 = vsub.f32 %v440, %v263
        %v447 = vsub.f32 %v442, %v264
        %p448 = scmp.lt.s32.totalorder %s19, 3
        // Predicated region
        $region52: #{tpu_custom_call.1} parent=39 // pred_check
          %p449 = pneg %p448
        $region53: #{tpu_custom_call.1} parent=39 // pred_check_branch
          %451 = sbr.rel (%p449) target = $region55
        $region54: #{tpu_custom_call.1} parent=39 // pred_region
          %v452 = vld [vmem:[#allocation2] sm:$0x1]
          %v453 = vsel %vm292, %v263, 0.0
          %v454 = vsel %vm292, %v264, 0.0
          %v455 = vadd.f32 %v453, %v454
          %v456 = vrot.slane %v455, 4
          %v457 = vadd.f32 %v455, %v456
          %v458 = vrot.slane %v457, 2
          %v459 = vadd.f32 %v457, %v458
          %v460 = vrot.slane %v459, 1
          %v461 = vadd.f32 %v459, %v460
          %v462 = vadd.f32 %v452, %v461
          %vm463 = vcmask 253952
          %464 = vst.msk [vmem:[#allocation2] sm:$0x1] %vm463, %v462
          %v465 = vld [vmem:[#allocation3] sm:$0x1]
          %v466 = vmul.f32 %v446, %v446
          %v467 = vmul.f32 %v447, %v447
          %v468 = vsel %vm292, %v466, 0.0
          %v469 = vsel %vm292, %v467, 0.0
          %v470 = vadd.f32 %v468, %v469
          %v471 = vrot.slane %v470, 4
          %v472 = vadd.f32 %v470, %v471
          %v473 = vrot.slane %v472, 2
          %v474 = vadd.f32 %v472, %v473
          %v475 = vrot.slane %v474, 1
          %v476 = vadd.f32 %v474, %v475
          %v477 = vadd.f32 %v465, %v476
          %478 = vst.msk [vmem:[#allocation3] sm:$0x1] %vm463, %v477
          %v479 = vld [vmem:[#allocation4] sm:$0x1]
          %v480 = vmul.f32 %v263, %v263
          %v481 = vmul.f32 %v264, %v264
          %v482 = vsel %vm292, %v480, 0.0
          %v483 = vsel %vm292, %v481, 0.0
          %v484 = vadd.f32 %v482, %v483
          %v485 = vrot.slane %v484, 4
          %v486 = vadd.f32 %v484, %v485
          %v487 = vrot.slane %v486, 2
          %v488 = vadd.f32 %v486, %v487
          %v489 = vrot.slane %v488, 1
          %v490 = vadd.f32 %v488, %v489
          %v491 = vadd.f32 %v479, %v490
          %492 = vst.msk [vmem:[#allocation4] sm:$0x1] %vm463, %v491
        $region55: #{tpu_custom_call.1} parent=39 // pred_fallthru
          _
        %p493 = scmp.eq.s32.totalorder %s19, 3
        // Predicated region
        $region56: #{tpu_custom_call.1} parent=39 // pred_check
          %p494 = pneg %p493
        $region57: #{tpu_custom_call.1} parent=39 // pred_check_branch
          %496 = sbr.rel (%p494) target = $region59
        $region58: #{tpu_custom_call.1} parent=39 // pred_region
          %s497 = smul.u32 %s19, 16
          %v498 = vlaneseq
          %v499 = vshrl.u32 %v498, 7
          %v500 = vadd.s32 %v499, 8
          %v501 = vstv %s497
          %v502 = vadd.s32 %v501, %v499
          %v503 = vadd.s32 %v501, %v500
          %vm504 = vcmp.lt.s32.totalorder %v502, 50
          %vm505 = vcmp.lt.s32.totalorder %v503, 50
          %v506 = vsel %vm504, 1, 0
          %v507 = vsel %vm505, 1, 0
          %vm508 = vcmp.eq.s32.totalorder %v506, 1
          %vm509 = vcmp.eq.s32.totalorder %v507, 1
          %v510 = vsel %vm508, %v263, 0.0
          %v511 = vsel %vm509, %v264, 0.0
          %v512 = vsel %vm508, %v446, 0.0
          %v513 = vsel %vm509, %v447, 0.0
          %v514 = vld [vmem:[#allocation2] sm:$0x1]
          %v515 = vsel %vm292, %v510, 0.0
          %v516 = vsel %vm292, %v511, 0.0
          %v517 = vadd.f32 %v515, %v516
          %v518 = vrot.slane %v517, 4
          %v519 = vadd.f32 %v517, %v518
          %v520 = vrot.slane %v519, 2
          %v521 = vadd.f32 %v519, %v520
          %v522 = vrot.slane %v521, 1
          %v523 = vadd.f32 %v521, %v522
          %v524 = vadd.f32 %v514, %v523
          %vm525 = vcmask 253952
          %526 = vst.msk [vmem:[#allocation2] sm:$0x1] %vm525, %v524
          %v527 = vld [vmem:[#allocation3] sm:$0x1]
          %v528 = vmul.f32 %v512, %v512
          %v529 = vmul.f32 %v513, %v513
          %v530 = vsel %vm292, %v528, 0.0
          %v531 = vsel %vm292, %v529, 0.0
          %v532 = vadd.f32 %v530, %v531
          %v533 = vrot.slane %v532, 4
          %v534 = vadd.f32 %v532, %v533
          %v535 = vrot.slane %v534, 2
          %v536 = vadd.f32 %v534, %v535
          %v537 = vrot.slane %v536, 1
          %v538 = vadd.f32 %v536, %v537
          %v539 = vadd.f32 %v527, %v538
          %540 = vst.msk [vmem:[#allocation3] sm:$0x1] %vm525, %v539
          %v541 = vld [vmem:[#allocation4] sm:$0x1]
          %v542 = vmul.f32 %v510, %v510
          %v543 = vmul.f32 %v511, %v511
          %v544 = vsel %vm292, %v542, 0.0
          %v545 = vsel %vm292, %v543, 0.0
          %v546 = vadd.f32 %v544, %v545
          %v547 = vrot.slane %v546, 4
          %v548 = vadd.f32 %v546, %v547
          %v549 = vrot.slane %v548, 2
          %v550 = vadd.f32 %v548, %v549
          %v551 = vrot.slane %v550, 1
          %v552 = vadd.f32 %v550, %v551
          %v553 = vadd.f32 %v541, %v552
          %554 = vst.msk [vmem:[#allocation4] sm:$0x1] %vm525, %v553
          %v555 = vld [vmem:[#allocation2] sm:$0x1]
          %v556 = vld [vmem:[#allocation4] sm:$0x1]
          %v557 = vmul.f32 %v555, %v555
          %v558 = vmul.f32 %v557, 0.02
          %v559 = vsub.f32 %v556, %v558
          %v560 = vld [vmem:[#allocation3] sm:$0x1]
          %v561 = vsel %vm525, %v560, 0.0
          %562 = vadd.xlane.f32.xlu0 %v561
          %v563 = vpop.xlane.xlu0 %562
          %v564 = vsel %vm525, %v559, 0.0
          %565 = vadd.xlane.f32.xlu0 %v564
          %v566 = vpop.xlane.xlu0 %565
          %v567 = vrcp.pop %v566
          %v568 = vmul.f32 %v566, %v567
          %v569 = vsub.f32 1.0, %v568
          %v570 = vmul.f32 %v567, %v569
          %v571 = vadd.f32 %v567, %v570
          %vm572 = vweird.f32 %v566
          %vm573 = vweird.f32 %v567
          %vm574 = vmor %vm572, %vm573
          %v575 = vsel %vm574, %v567, %v571
          %v576 = vand.u32 2147483647, %v566
          %vm577 = vcmp.eq.f32.partialorder %v576, 8.507059e+37
          %v578 = vand.u32 %v566, 2147483648
          %v579 = vor.u32 1.1754944e-38, %v578
          %v580 = vsel %vm577, %v579, %v575
          %v581 = vmul.f32 %v563, %v580
          %vm582 = vcmask 0
          %583 = vst.msk [vmem:[#allocation5] sm:$0x1] %vm582, %v581
        $region59: #{tpu_custom_call.1} parent=39 // pred_fallthru
          _
        %s584 = smul.u32 2, %s19
        %p585 = scmp.lt.s32.totalorder %s584, 7
        %s586 = scalar_select %p585, %s584, 7
        %s587 = smul.addr %s586, 8
        %s588 = scalar_lea.vmem %s5, %s587
        // Predicated region
        $region60: #{tpu_custom_call.1} parent=39 // pred_check
          %p589 = pneg %p147
        $region61: #{tpu_custom_call.1} parent=39 // pred_check_branch
          %591 = sbr.rel (%p589) target = $region63
        $region62: #{tpu_custom_call.1} parent=39 // pred_region
          %s592 = smul.u32 2, %s19
        $region63: #{tpu_custom_call.1} parent=39 // pred_fallthru
          _
        // Predicated region
        $region64: #{tpu_custom_call.1} parent=39 // pred_check
          %p593 = pneg %p168
        $region65: #{tpu_custom_call.1} parent=39 // pred_check_branch
          %595 = sbr.rel (%p593) target = $region67
        $region66: #{tpu_custom_call.1} parent=39 // pred_region
          %597 = vsyncadd [#allocation6], 0
          %s599 = sshll.u32 [#allocation5], 4
          %s600 = int_to_ptr.vmem [resolvable:$true] %s599
          %s601 = sshll.u32 %s6, 4
          %s602 = int_to_ptr.hbm [resolvable:$true] %s601
          %604 = dma.vmem_to_hbm [thread:$0]  %s600, 16, %s602, [#allocation6]
        $region67: #{tpu_custom_call.1} parent=39 // pred_fallthru
          _
        // Predicated region
        $region68: #{tpu_custom_call.1} parent=39 // pred_check
          %p605 = pneg %p168
        $region69: #{tpu_custom_call.1} parent=39 // pred_check_branch
          %607 = sbr.rel (%p605) target = $region71
        $region70: #{tpu_custom_call.1} parent=39 // pred_region
          %609 = dma.done [#allocation6], 16
        $region71: #{tpu_custom_call.1} parent=39 // pred_fallthru
          _
      $region40: #{tpu_custom_call.1} parent=5 // pred_fallthru
        _
      %p610 = scmp.le.s32.totalorder 2, %s14
      // Predicated region
      $region72: #{tpu_custom_call.1} parent=5 // pred_check
        %p611 = pneg %p610
      $region73: #{tpu_custom_call.1} parent=5 // pred_check_branch
        %613 = sbr.rel (%p611) target = $region75
      $region74: #{tpu_custom_call.1} parent=5 // pred_region
        %s614 = ssub.s32 %s14, 2
        // Predicated region
        $region76: #{tpu_custom_call.1} parent=74 // pred_check
          %p615 = pneg %p153
        $region77: #{tpu_custom_call.1} parent=74 // pred_check_branch
          %617 = sbr.rel (%p615) target = $region79
        $region78: #{tpu_custom_call.1} parent=74 // pred_region
          %s618 = smul.u32 2, %s20
          %p619 = scmp.lt.s32.totalorder %s618, 7
          %s620 = scalar_select %p619, %s618, 7
          %s621 = smul.addr %s620, 8
          %s622 = scalar_lea.vmem %s5, %s621
        $region79: #{tpu_custom_call.1} parent=74 // pred_fallthru
          _
      $region75: #{tpu_custom_call.1} parent=5 // pred_fallthru
        _
    $region6: #{tpu_custom_call.1} parent=1 // loop_footer
      %s18 = sadd.s32 1, %s14
    $region7: #{tpu_custom_call.1} parent=1 // loop_footer_branch
      %13 = sbr.rel target = $region3
    $region8: #{tpu_custom_call.1} parent=1 // loop_exit
      _
    %623 = vsyncpa [#allocation6], 1
    %s624 = scalar_lea.sflag [#allocation6], 1
    %625 = vsyncpa %s624, 1

</llo_original>
